<compile_context>
chip_gen: v7x
topology: tpu7x:2x2x1
jax: 0.10.0
libtpu: 0.0.40
codegen_flags: <defaults>
</compile_context>

<pallas_src>
import functools

import jax
import jax.numpy as jnp
from jax.experimental import pallas as pl
from jax.experimental.pallas import tpu as pltpu

EPS = 1e-5  # BatchNorm2d default eps
_VMEM_LIMIT = 32 * 1024 * 1024  # fits the 32 MiB scoped budget on v6e/v7x


def _round_up(x, m):
    return (x + m - 1) // m * m


def _pick_row_tile(m):
    for t in (512, 256, 128, 64, 32, 16, 8):
        if m % t == 0 and m // t >= 2:
            return t
    return m


# --------------------------------------------------------------------------
# Pass 1: 3x3 conv (9 accumulated MXU matmuls) + per-row partial BN statistics
# --------------------------------------------------------------------------
def _conv_stats_kernel(x0_ref, x1_ref, x2_ref, w_ref, h_ref, stats_ref):
    # x{0,1,2}_ref : (W+2, CP)      bf16  padded input rows h+0, h+1, h+2
    # w_ref        : (9, CP, CoutP) bf16  per-tap weight matrices (tap = kh*3+kw)
    # h_ref        : (W, CoutP)     f32   conv output for image row (n, h)
    # stats_ref    : (2, CoutP)     f32   per-row [sum, sum-of-squares] partials
    w_dim, cout_p = h_ref.shape
    xrows = (x0_ref, x1_ref, x2_ref)

    acc = jnp.zeros((w_dim, cout_p), jnp.float32)
    for kh in range(3):
        for kw in range(3):
            lhs = xrows[kh][kw:kw + w_dim, :]          # static sublane-offset slice
            acc = acc + jnp.dot(lhs, w_ref[kh * 3 + kw],
                                preferred_element_type=jnp.float32)

    # NOTE: conv bias intentionally omitted — it cancels against the BN batch mean.
    h_ref[...] = acc
    stats_ref[0:1, :] = jnp.sum(acc, axis=0, keepdims=True)
    stats_ref[1:2, :] = jnp.sum(acc * acc, axis=0, keepdims=True)


# --------------------------------------------------------------------------
# Pass 2: per-channel affine (folded BN) + activation over lane-dense M tiles
# --------------------------------------------------------------------------
def _bn_act_kernel(h_ref, scale_ref, shift_ref, o_ref, *, act):
    y = h_ref[...] * scale_ref[...] + shift_ref[...]   # (tm, CoutP) * (1, CoutP)
    if act == "relu":
        y = jnp.maximum(y, 0.0)
    elif act == "sigmoid":
        y = jax.nn.sigmoid(y)
    elif act == "tanh":
        y = jnp.tanh(y)
    o_ref[...] = y


def conv_transpose_block(x, wt, bias, gamma, beta, *, kernel_size=3, stride=1,
                         padding=1, act="relu"):
    """x: (N, Cin, H, W) NCHW.  wt: (Cin, Cout, K, K) (ConvTranspose2d layout)."""
    assert kernel_size == 3 and stride == 1 and padding == 1, \
        "kernel specialized to the module defaults (k=3, s=1, p=1)"
    assert act in ("relu", "sigmoid", "tanh")
    del bias  # cancels exactly under training-mode BatchNorm (mean subtraction)
    # TODO(synk): bn=False path (bias + act only) and BatchNorm running-stat
    # buffer updates (training side effect) are not implemented.

    N, Cin, H, W = x.shape
    K = kernel_size
    Cout = wt.shape[1]
    pad_eff = K - 1 - padding        # stride-1 ConvTranspose == conv w/ flipped kernel
    Wp = W + 2 * pad_eff

    CP = _round_up(Cin, 128)         # MXU contraction depth / input lane alignment
    CoutP = _round_up(Cout, 128)     # lane-dense output channels (unmasked stores)

    # ---- layout glue (plain JAX): NCHW -> padded NHWC, per-tap weight matrices ----
    x_nhwc = jnp.transpose(x, (0, 2, 3, 1))
    x_pad = jnp.pad(
        x_nhwc, ((0, 0), (pad_eff, pad_eff), (pad_eff, pad_eff), (0, CP - Cin))
    ).astype(jnp.bfloat16)                              # (N, H+2, W+2, CP)

    w_flip = wt[:, :, ::-1, ::-1]                       # (Cin, Cout, K, K)
    w_taps = jnp.transpose(w_flip, (2, 3, 0, 1)).reshape(K * K, Cin, Cout)
    w_taps = jnp.pad(w_taps, ((0, 0), (0, CP - Cin), (0, CoutP - Cout)))
    w_taps = w_taps.astype(jnp.bfloat16)                # (9, CP, CoutP)

    # ---- pass 1: conv + partial stats, grid over (N, H), fully parallel ----
    def _row_spec(dh):
        return pl.BlockSpec((None, None, Wp, CP),
                            lambda n, h, d=dh: (n, h + d, 0, 0))

    h_conv, stats = pl.pallas_call(
        _conv_stats_kernel,
        grid=(N, H),
        in_specs=[
            _row_spec(0), _row_spec(1), _row_spec(2),
            pl.BlockSpec((K * K, CP, CoutP), lambda n, h: (0, 0, 0)),  # resident
        ],
        out_specs=[
            pl.BlockSpec((None, None, W, CoutP), lambda n, h: (n, h, 0, 0)),
            pl.BlockSpec((None, None, 2, CoutP), lambda n, h: (n, h, 0, 0)),
        ],
        out_shape=[
            jax.ShapeDtypeStruct((N, H, W, CoutP), jnp.float32),
            jax.ShapeDtypeStruct((N, H, 2, CoutP), jnp.float32),
        ],
        compiler_params=pltpu.CompilerParams(
            dimension_semantics=("parallel", "parallel"),
            vmem_limit_bytes=_VMEM_LIMIT),
    )(x_pad, x_pad, x_pad, w_taps)

    # ---- combine tiny per-row partials into folded BN scale/shift (f32) ----
    M = N * H * W
    s = jnp.sum(stats, axis=(0, 1))                     # (2, CoutP)
    mean = s[0] / M
    var = jnp.maximum(s[1] / M - mean * mean, 0.0)      # biased var, clamped
    inv_std = jax.lax.rsqrt(var + EPS)
    gamma_p = jnp.pad(gamma.astype(jnp.float32), (0, CoutP - Cout))
    beta_p = jnp.pad(beta.astype(jnp.float32), (0, CoutP - Cout))
    scale = (gamma_p * inv_std).reshape(1, CoutP)
    shift = (beta_p - mean * gamma_p * inv_std).reshape(1, CoutP)

    # ---- pass 2: normalize + activation over lane-dense (M, CoutP) tiles ----
    h_rows = h_conv.reshape(M, CoutP)                   # contiguous reshape
    tm = _pick_row_tile(M)
    out = pl.pallas_call(
        functools.partial(_bn_act_kernel, act=act),
        grid=(M // tm,),
        in_specs=[
            pl.BlockSpec((tm, CoutP), lambda i: (i, 0)),
            pl.BlockSpec((1, CoutP), lambda i: (0, 0)),  # VMEM-resident across steps
            pl.BlockSpec((1, CoutP), lambda i: (0, 0)),
        ],
        out_specs=pl.BlockSpec((tm, CoutP), lambda i: (i, 0)),
        out_shape=jax.ShapeDtypeStruct((M, CoutP), jnp.float32),
        compiler_params=pltpu.CompilerParams(
            dimension_semantics=("parallel",),
            vmem_limit_bytes=_VMEM_LIMIT),
    )(h_rows, scale, shift)

    # back to PyTorch NCHW, dropping the channel padding
    out = out.reshape(N, H, W, CoutP)[:, :, :, :Cout]
    return jnp.transpose(out, (0, 3, 1, 2))


if __name__ == "__main__":
    key = jax.random.PRNGKey(0)
    k_x, k_w, k_b = jax.random.split(key, 3)

    N, Cin, H, W, Cout, Ksz = 2, 4, 16, 16, 8, 3

    x = jax.random.normal(k_x, (N, Cin, H, W), dtype=jnp.float32)
    # ConvTranspose2d params: weight (Cin, Cout, K, K), bias (Cout,)
    wt = 0.1 * jax.random.normal(k_w, (Cin, Cout, Ksz, Ksz), dtype=jnp.float32)
    bias = 0.1 * jax.random.normal(k_b, (Cout,), dtype=jnp.float32)
    # Fresh BatchNorm2d affine params
    gamma = jnp.ones((Cout,), dtype=jnp.float32)
    beta = jnp.zeros((Cout,), dtype=jnp.float32)

    y = conv_transpose_block(x, wt, bias, gamma, beta,
                             kernel_size=Ksz, stride=1, padding=1, act="relu")
    jax.block_until_ready(y)
    assert y.shape == (N, Cout, H, W)
    assert bool(jnp.all(jnp.isfinite(y)))
    print("KERNEL_OK")
</pallas_src>

<mosaic_0001>
module attributes {stable_mosaic.version = 11 : i64} {
  func.func @_conv_stats_kernel(%arg0: i32, %arg1: i32, %arg2: memref<1x1x18x128xbf16, #tpu.memory_space<vmem>>, %arg3: memref<1x1x18x128xbf16, #tpu.memory_space<vmem>>, %arg4: memref<1x1x18x128xbf16, #tpu.memory_space<vmem>>, %arg5: memref<9x128x128xbf16, #tpu.memory_space<vmem>>, %arg6: memref<1x1x16x128xf32, #tpu.memory_space<vmem>>, %arg7: memref<1x1x2x128xf32, #tpu.memory_space<vmem>>) attributes {dimension_semantics = [#tpu.dimension_semantics<parallel>, #tpu.dimension_semantics<parallel>], iteration_bounds = array<i64: 2, 16>, scalar_prefetch = 0 : i64, scratch_operands = 0 : i64, tpu.core_type = #tpu.core_type<tc>, window_params = [{transform_indices = @transform_0, window_bounds = array<i64: 1, 1, 18, 128>}, {transform_indices = @transform_1, window_bounds = array<i64: 1, 1, 18, 128>}, {transform_indices = @transform_2, window_bounds = array<i64: 1, 1, 18, 128>}, {pipeline_mode = #tpu.pipeline_mode<synchronous>, transform_indices = @transform_3, window_bounds = array<i64: 9, 128, 128>}, {transform_indices = @transform_4, window_bounds = array<i64: 1, 1, 16, 128>}, {transform_indices = @transform_5, window_bounds = array<i64: 1, 1, 2, 128>}]} {
    %cst = arith.constant 0.000000e+00 : f32
    %0 = vector.broadcast %cst : f32 to vector<16x128xf32>
    %c0 = arith.constant 0 : index
    %c0_0 = arith.constant 0 : index
    %c0_1 = arith.constant 0 : index
    %c0_2 = arith.constant 0 : index
    %1 = vector.load %arg2[%c0, %c0_0, %c0_1, %c0_2] : memref<1x1x18x128xbf16, #tpu.memory_space<vmem>>, vector<1x1x16x128xbf16>
    %2 = vector.shape_cast %1 : vector<1x1x16x128xbf16> to vector<16x128xbf16>
    %c0_3 = arith.constant 0 : index
    %c0_4 = arith.constant 0 : index
    %c0_5 = arith.constant 0 : index
    %3 = vector.load %arg5[%c0_3, %c0_4, %c0_5] : memref<9x128x128xbf16, #tpu.memory_space<vmem>>, vector<1x128x128xbf16>
    %4 = vector.shape_cast %3 : vector<1x128x128xbf16> to vector<128x128xbf16>
    %cst_6 = arith.constant dense<0.000000e+00> : vector<16x128xf32>
    %5 = tpu.matmul %2, %4, %cst_6 {dimension_numbers = #tpu.dot_dimension_numbers<[1], [0], [0], [1], [0, 0, 1, 1], [], []>} : vector<16x128xbf16>, vector<128x128xbf16>, vector<16x128xf32> -> vector<16x128xf32>
    %6 = arith.addf %0, %5 : vector<16x128xf32>
    %c0_7 = arith.constant 0 : index
    %c0_8 = arith.constant 0 : index
    %c1 = arith.constant 1 : index
    %c0_9 = arith.constant 0 : index
    %7 = vector.load %arg2[%c0_7, %c0_8, %c1, %c0_9] : memref<1x1x18x128xbf16, #tpu.memory_space<vmem>>, vector<1x1x16x128xbf16>
    %8 = vector.shape_cast %7 : vector<1x1x16x128xbf16> to vector<16x128xbf16>
    %c1_10 = arith.constant 1 : index
    %c0_11 = arith.constant 0 : index
    %c0_12 = arith.constant 0 : index
    %9 = vector.load %arg5[%c1_10, %c0_11, %c0_12] : memref<9x128x128xbf16, #tpu.memory_space<vmem>>, vector<1x128x128xbf16>
    %10 = vector.shape_cast %9 : vector<1x128x128xbf16> to vector<128x128xbf16>
    %cst_13 = arith.constant dense<0.000000e+00> : vector<16x128xf32>
    %11 = tpu.matmul %8, %10, %cst_13 {dimension_numbers = #tpu.dot_dimension_numbers<[1], [0], [0], [1], [0, 0, 1, 1], [], []>} : vector<16x128xbf16>, vector<128x128xbf16>, vector<16x128xf32> -> vector<16x128xf32>
    %12 = arith.addf %6, %11 : vector<16x128xf32>
    %c0_14 = arith.constant 0 : index
    %c0_15 = arith.constant 0 : index
    %c2 = arith.constant 2 : index
    %c0_16 = arith.constant 0 : index
    %13 = vector.load %arg2[%c0_14, %c0_15, %c2, %c0_16] : memref<1x1x18x128xbf16, #tpu.memory_space<vmem>>, vector<1x1x16x128xbf16>
    %14 = vector.shape_cast %13 : vector<1x1x16x128xbf16> to vector<16x128xbf16>
    %c2_17 = arith.constant 2 : index
    %c0_18 = arith.constant 0 : index
    %c0_19 = arith.constant 0 : index
    %15 = vector.load %arg5[%c2_17, %c0_18, %c0_19] : memref<9x128x128xbf16, #tpu.memory_space<vmem>>, vector<1x128x128xbf16>
    %16 = vector.shape_cast %15 : vector<1x128x128xbf16> to vector<128x128xbf16>
    %cst_20 = arith.constant dense<0.000000e+00> : vector<16x128xf32>
    %17 = tpu.matmul %14, %16, %cst_20 {dimension_numbers = #tpu.dot_dimension_numbers<[1], [0], [0], [1], [0, 0, 1, 1], [], []>} : vector<16x128xbf16>, vector<128x128xbf16>, vector<16x128xf32> -> vector<16x128xf32>
    %18 = arith.addf %12, %17 : vector<16x128xf32>
    %c0_21 = arith.constant 0 : index
    %c0_22 = arith.constant 0 : index
    %c0_23 = arith.constant 0 : index
    %c0_24 = arith.constant 0 : index
    %19 = vector.load %arg3[%c0_21, %c0_22, %c0_23, %c0_24] : memref<1x1x18x128xbf16, #tpu.memory_space<vmem>>, vector<1x1x16x128xbf16>
    %20 = vector.shape_cast %19 : vector<1x1x16x128xbf16> to vector<16x128xbf16>
    %c3 = arith.constant 3 : index
    %c0_25 = arith.constant 0 : index
    %c0_26 = arith.constant 0 : index
    %21 = vector.load %arg5[%c3, %c0_25, %c0_26] : memref<9x128x128xbf16, #tpu.memory_space<vmem>>, vector<1x128x128xbf16>
    %22 = vector.shape_cast %21 : vector<1x128x128xbf16> to vector<128x128xbf16>
    %cst_27 = arith.constant dense<0.000000e+00> : vector<16x128xf32>
    %23 = tpu.matmul %20, %22, %cst_27 {dimension_numbers = #tpu.dot_dimension_numbers<[1], [0], [0], [1], [0, 0, 1, 1], [], []>} : vector<16x128xbf16>, vector<128x128xbf16>, vector<16x128xf32> -> vector<16x128xf32>
    %24 = arith.addf %18, %23 : vector<16x128xf32>
    %c0_28 = arith.constant 0 : index
    %c0_29 = arith.constant 0 : index
    %c1_30 = arith.constant 1 : index
    %c0_31 = arith.constant 0 : index
    %25 = vector.load %arg3[%c0_28, %c0_29, %c1_30, %c0_31] : memref<1x1x18x128xbf16, #tpu.memory_space<vmem>>, vector<1x1x16x128xbf16>
    %26 = vector.shape_cast %25 : vector<1x1x16x128xbf16> to vector<16x128xbf16>
    %c4 = arith.constant 4 : index
    %c0_32 = arith.constant 0 : index
    %c0_33 = arith.constant 0 : index
    %27 = vector.load %arg5[%c4, %c0_32, %c0_33] : memref<9x128x128xbf16, #tpu.memory_space<vmem>>, vector<1x128x128xbf16>
    %28 = vector.shape_cast %27 : vector<1x128x128xbf16> to vector<128x128xbf16>
    %cst_34 = arith.constant dense<0.000000e+00> : vector<16x128xf32>
    %29 = tpu.matmul %26, %28, %cst_34 {dimension_numbers = #tpu.dot_dimension_numbers<[1], [0], [0], [1], [0, 0, 1, 1], [], []>} : vector<16x128xbf16>, vector<128x128xbf16>, vector<16x128xf32> -> vector<16x128xf32>
    %30 = arith.addf %24, %29 : vector<16x128xf32>
    %c0_35 = arith.constant 0 : index
    %c0_36 = arith.constant 0 : index
    %c2_37 = arith.constant 2 : index
    %c0_38 = arith.constant 0 : index
    %31 = vector.load %arg3[%c0_35, %c0_36, %c2_37, %c0_38] : memref<1x1x18x128xbf16, #tpu.memory_space<vmem>>, vector<1x1x16x128xbf16>
    %32 = vector.shape_cast %31 : vector<1x1x16x128xbf16> to vector<16x128xbf16>
    %c5 = arith.constant 5 : index
    %c0_39 = arith.constant 0 : index
    %c0_40 = arith.constant 0 : index
    %33 = vector.load %arg5[%c5, %c0_39, %c0_40] : memref<9x128x128xbf16, #tpu.memory_space<vmem>>, vector<1x128x128xbf16>
    %34 = vector.shape_cast %33 : vector<1x128x128xbf16> to vector<128x128xbf16>
    %cst_41 = arith.constant dense<0.000000e+00> : vector<16x128xf32>
    %35 = tpu.matmul %32, %34, %cst_41 {dimension_numbers = #tpu.dot_dimension_numbers<[1], [0], [0], [1], [0, 0, 1, 1], [], []>} : vector<16x128xbf16>, vector<128x128xbf16>, vector<16x128xf32> -> vector<16x128xf32>
    %36 = arith.addf %30, %35 : vector<16x128xf32>
    %c0_42 = arith.constant 0 : index
    %c0_43 = arith.constant 0 : index
    %c0_44 = arith.constant 0 : index
    %c0_45 = arith.constant 0 : index
    %37 = vector.load %arg4[%c0_42, %c0_43, %c0_44, %c0_45] : memref<1x1x18x128xbf16, #tpu.memory_space<vmem>>, vector<1x1x16x128xbf16>
    %38 = vector.shape_cast %37 : vector<1x1x16x128xbf16> to vector<16x128xbf16>
    %c6 = arith.constant 6 : index
    %c0_46 = arith.constant 0 : index
    %c0_47 = arith.constant 0 : index
    %39 = vector.load %arg5[%c6, %c0_46, %c0_47] : memref<9x128x128xbf16, #tpu.memory_space<vmem>>, vector<1x128x128xbf16>
    %40 = vector.shape_cast %39 : vector<1x128x128xbf16> to vector<128x128xbf16>
    %cst_48 = arith.constant dense<0.000000e+00> : vector<16x128xf32>
    %41 = tpu.matmul %38, %40, %cst_48 {dimension_numbers = #tpu.dot_dimension_numbers<[1], [0], [0], [1], [0, 0, 1, 1], [], []>} : vector<16x128xbf16>, vector<128x128xbf16>, vector<16x128xf32> -> vector<16x128xf32>
    %42 = arith.addf %36, %41 : vector<16x128xf32>
    %c0_49 = arith.constant 0 : index
    %c0_50 = arith.constant 0 : index
    %c1_51 = arith.constant 1 : index
    %c0_52 = arith.constant 0 : index
    %43 = vector.load %arg4[%c0_49, %c0_50, %c1_51, %c0_52] : memref<1x1x18x128xbf16, #tpu.memory_space<vmem>>, vector<1x1x16x128xbf16>
    %44 = vector.shape_cast %43 : vector<1x1x16x128xbf16> to vector<16x128xbf16>
    %c7 = arith.constant 7 : index
    %c0_53 = arith.constant 0 : index
    %c0_54 = arith.constant 0 : index
    %45 = vector.load %arg5[%c7, %c0_53, %c0_54] : memref<9x128x128xbf16, #tpu.memory_space<vmem>>, vector<1x128x128xbf16>
    %46 = vector.shape_cast %45 : vector<1x128x128xbf16> to vector<128x128xbf16>
    %cst_55 = arith.constant dense<0.000000e+00> : vector<16x128xf32>
    %47 = tpu.matmul %44, %46, %cst_55 {dimension_numbers = #tpu.dot_dimension_numbers<[1], [0], [0], [1], [0, 0, 1, 1], [], []>} : vector<16x128xbf16>, vector<128x128xbf16>, vector<16x128xf32> -> vector<16x128xf32>
    %48 = arith.addf %42, %47 : vector<16x128xf32>
    %c0_56 = arith.constant 0 : index
    %c0_57 = arith.constant 0 : index
    %c2_58 = arith.constant 2 : index
    %c0_59 = arith.constant 0 : index
    %49 = vector.load %arg4[%c0_56, %c0_57, %c2_58, %c0_59] : memref<1x1x18x128xbf16, #tpu.memory_space<vmem>>, vector<1x1x16x128xbf16>
    %50 = vector.shape_cast %49 : vector<1x1x16x128xbf16> to vector<16x128xbf16>
    %c8 = arith.constant 8 : index
    %c0_60 = arith.constant 0 : index
    %c0_61 = arith.constant 0 : index
    %51 = vector.load %arg5[%c8, %c0_60, %c0_61] : memref<9x128x128xbf16, #tpu.memory_space<vmem>>, vector<1x128x128xbf16>
    %52 = vector.shape_cast %51 : vector<1x128x128xbf16> to vector<128x128xbf16>
    %cst_62 = arith.constant dense<0.000000e+00> : vector<16x128xf32>
    %53 = tpu.matmul %50, %52, %cst_62 {dimension_numbers = #tpu.dot_dimension_numbers<[1], [0], [0], [1], [0, 0, 1, 1], [], []>} : vector<16x128xbf16>, vector<128x128xbf16>, vector<16x128xf32> -> vector<16x128xf32>
    %54 = arith.addf %48, %53 : vector<16x128xf32>
    %c0_63 = arith.constant 0 : index
    %c0_64 = arith.constant 0 : index
    %c0_65 = arith.constant 0 : index
    %c0_66 = arith.constant 0 : index
    %55 = vector.load %arg6[%c0_63, %c0_64, %c0_65, %c0_66] : memref<1x1x16x128xf32, #tpu.memory_space<vmem>>, vector<1x1x16x128xf32>
    %56 = vector.shape_cast %55 : vector<1x1x16x128xf32> to vector<16x128xf32>
    %57 = vector.shape_cast %54 : vector<16x128xf32> to vector<1x1x16x128xf32>
    tpu.vector_store %arg6[%c0_63, %c0_64, %c0_65, %c0_66], %57 {strides = array<i32>} : memref<1x1x16x128xf32, #tpu.memory_space<vmem>>, vector<1x1x16x128xf32>,
    %cst_67 = arith.constant dense<0.000000e+00> : vector<128xf32>
    %58 = vector.multi_reduction <add>, %54, %cst_67 [0] : vector<16x128xf32> to vector<128xf32>
    %59 = vector.shape_cast %58 : vector<128xf32> to vector<1x128xf32>
    %c0_68 = arith.constant 0 : index
    %c0_69 = arith.constant 0 : index
    %c0_70 = arith.constant 0 : index
    %c0_71 = arith.constant 0 : index
    %60 = vector.load %arg7[%c0_68, %c0_69, %c0_70, %c0_71] : memref<1x1x2x128xf32, #tpu.memory_space<vmem>>, vector<1x1x1x128xf32>
    %61 = vector.shape_cast %60 : vector<1x1x1x128xf32> to vector<1x128xf32>
    %62 = vector.shape_cast %59 : vector<1x128xf32> to vector<1x1x1x128xf32>
    tpu.vector_store %arg7[%c0_68, %c0_69, %c0_70, %c0_71], %62 {strides = array<i32>} : memref<1x1x2x128xf32, #tpu.memory_space<vmem>>, vector<1x1x1x128xf32>,
    %63 = arith.mulf %54, %54 : vector<16x128xf32>
    %cst_72 = arith.constant dense<0.000000e+00> : vector<128xf32>
    %64 = vector.multi_reduction <add>, %63, %cst_72 [0] : vector<16x128xf32> to vector<128xf32>
    %65 = vector.shape_cast %64 : vector<128xf32> to vector<1x128xf32>
    %c0_73 = arith.constant 0 : index
    %c0_74 = arith.constant 0 : index
    %c1_75 = arith.constant 1 : index
    %c0_76 = arith.constant 0 : index
    %66 = vector.load %arg7[%c0_73, %c0_74, %c1_75, %c0_76] : memref<1x1x2x128xf32, #tpu.memory_space<vmem>>, vector<1x1x1x128xf32>
    %67 = vector.shape_cast %66 : vector<1x1x1x128xf32> to vector<1x128xf32>
    %68 = vector.shape_cast %65 : vector<1x128xf32> to vector<1x1x1x128xf32>
    tpu.vector_store %arg7[%c0_73, %c0_74, %c1_75, %c0_76], %68 {strides = array<i32>} : memref<1x1x2x128xf32, #tpu.memory_space<vmem>>, vector<1x1x1x128xf32>,
    return
  }
  func.func @transform_0(%arg0: i32, %arg1: i32) -> (i32, i32, i32, i32) {
    %c0_i32 = arith.constant 0 : i32
    %0 = arith.addi %arg1, %c0_i32 : i32
    %c0_i32_0 = arith.constant 0 : i32
    %c0_i32_1 = arith.constant 0 : i32
    %c0_i32_2 = arith.constant 0 : i32
    return %arg0, %0, %c0_i32_0, %c0_i32_1 : i32, i32, i32, i32
  }
  func.func @transform_1(%arg0: i32, %arg1: i32) -> (i32, i32, i32, i32) {
    %c1_i32 = arith.constant 1 : i32
    %0 = arith.addi %arg1, %c1_i32 : i32
    %c0_i32 = arith.constant 0 : i32
    %c0_i32_0 = arith.constant 0 : i32
    %c0_i32_1 = arith.constant 0 : i32
    return %arg0, %0, %c0_i32, %c0_i32_0 : i32, i32, i32, i32
  }
  func.func @transform_2(%arg0: i32, %arg1: i32) -> (i32, i32, i32, i32) {
    %c2_i32 = arith.constant 2 : i32
    %0 = arith.addi %arg1, %c2_i32 : i32
    %c0_i32 = arith.constant 0 : i32
    %c0_i32_0 = arith.constant 0 : i32
    %c0_i32_1 = arith.constant 0 : i32
    return %arg0, %0, %c0_i32, %c0_i32_0 : i32, i32, i32, i32
  }
  func.func @transform_3(%arg0: i32, %arg1: i32) -> (i32, i32, i32) {
    %c0_i32 = arith.constant 0 : i32
    %c0_i32_0 = arith.constant 0 : i32
    %c0_i32_1 = arith.constant 0 : i32
    %c0_i32_2 = arith.constant 0 : i32
    return %c0_i32, %c0_i32_0, %c0_i32_1 : i32, i32, i32
  }
  func.func @transform_4(%arg0: i32, %arg1: i32) -> (i32, i32, i32, i32) {
    %c0_i32 = arith.constant 0 : i32
    %c0_i32_0 = arith.constant 0 : i32
    %c0_i32_1 = arith.constant 0 : i32
    return %arg0, %arg1, %c0_i32, %c0_i32_0 : i32, i32, i32, i32
  }
  func.func @transform_5(%arg0: i32, %arg1: i32) -> (i32, i32, i32, i32) {
    %c0_i32 = arith.constant 0 : i32
    %c0_i32_0 = arith.constant 0 : i32
    %c0_i32_1 = arith.constant 0 : i32
    return %arg0, %arg1, %c0_i32, %c0_i32_0 : i32, i32, i32, i32
  }
}

</mosaic_0001>

<llo_original>
// kernel: tpu_custom_call.1
$region0: #{tpu_custom_call.1}
  #allocation0 [shape = 'u32[]', space=smem, size = 0x4, offset = 0x4, fixed_abs, tag = 'smem constant byte address 0x4 - core index']
  #allocation1 [shape = 'u32[144,128]{1,0:T(1,128)}', space=vmem, size = 0x12000, scoped, tag = 'internal scratch']
  %s0 = inlined_call_operand.vmem [shape: bf16[2,18,18,128], index: 0, kind: input, shape index: {}]
  %s1 = inlined_call_operand.vmem [shape: bf16[2,18,18,128], index: 1, kind: input, shape index: {}]
  %s2 = inlined_call_operand.vmem [shape: bf16[2,18,18,128], index: 2, kind: input, shape index: {}]
  %s3 = inlined_call_operand.vmem [shape: bf16[9,128,128], index: 3, kind: input, shape index: {}]
  %s4 = inlined_call_operand.hbm [shape: f32[2,16,16,128], index: 4, kind: output, shape index: {0}]
  %s5 = inlined_call_operand.hbm [shape: f32[2,16,2,128], index: 5, kind: output, shape index: {1}]
  %6 = xla_tuple %s4, %s5
  %s7 = sld [smem:[#allocation0]]
  $region57: #{tpu_custom_call.1} parent=0
    _
  %s9 = ssub.s32 1, %s7
  %s10 = scalar_select 0, %s9, %s7
  $region1: #{tpu_custom_call.1} parent=0
    #allocation2 [shape = 'u8[16384]{0}', space=vmem, size = 0x4000, scoped, tag = 'output window, operand 0']
    #allocation3 [shape = 's32[2]{0}', space=sflag, size = 0x8, scoped, tag = 'scoped memory for tpu_custom_call.1']
    #allocation4 [shape = 'u8[2048]{0}', space=vmem, size = 0x800, scoped, tag = 'output window, operand 1']
    #allocation5 [shape = 's32[2]{0}', space=sflag, size = 0x8, scoped, tag = 'scoped memory for tpu_custom_call.1']
    %11 = vsyncpa [#allocation3], 0
    %s12 = scalar_lea.sflag [#allocation3], 1
    %13 = vsyncpa %s12, 0
    %14 = vsyncpa [#allocation5], 0
    %s15 = scalar_lea.sflag [#allocation5], 1
    %16 = vsyncpa %s15, 0
    loop: start=0, step=1, limit=34
    $region2: #{tpu_custom_call.1} parent=1 // loop_pre_header
      _
    $region3: #{tpu_custom_call.1} parent=1 // loop_header
      %s18 = sphi 0, %s22
      %p19 = scmp.ge.s32.totalorder %s18, 34
      %s25 = sphi 0, %s37
      %s26 = sphi 0, %s33
      %s27 = sphi 0, %s25
      %s28 = sphi 0, %s26
      %s29 = sphi 0, %s27
      %s30 = sphi 0, %s28
      %s42 = sphi 0, %s44
      %s45 = sphi 0, %s42
      %s46 = sphi 0, %s45
      %s62 = sphi 0, %s46
      %s72 = sphi 0, %s74
      %s75 = sphi 0, %s72
      %s76 = sphi 0, %s75
      %s92 = sphi 0, %s76
      %s102 = sphi 0, %s104
      %s105 = sphi 0, %s102
      %s106 = sphi 0, %s105
      %s122 = sphi 0, %s106
      %s126 = sphi 0, %s126
      %s128 = sphi 0, %s126
      %s129 = sphi 0, %s128
      %s143 = sphi 0, %s129
      %s151 = sphi 0, %s153
      %s154 = sphi 0, %s151
      %s155 = sphi 0, %s154
      %s171 = sphi 0, %s155
      %s179 = sphi 0, %s181
      %s182 = sphi 0, %s179
      %s183 = sphi 0, %s182
      %s199 = sphi 0, %s183
    $region4: #{tpu_custom_call.1} parent=1 // loop_header_branch
      %21 = sbr.rel (%p19) target = $region8
    $region5: #{tpu_custom_call.1} parent=1 // loop_body
      %s23 = ssub.s32 %s18, 1
      %s24 = ssub.s32 %s18, 2
      %s31 = sadd.s32 1, %s26
      %p32 = scmp.ge.s32.totalorder %s31, 16
      %s33 = scalar_select %p32, 0, %s31
      %s34 = sadd.s32 1, %s25
      %s35 = scalar_select %p32, %s34, %s25
      %p36 = scmp.ge.s32.totalorder %s35, 2
      %s37 = scalar_select %p36, 0, %s35
      %s38 = ssub.s32 %s25, %s37
      %s39 = ssub.s32 %s26, %s33
      %s40 = sor.u32 %s38, %s39
      %p41 = scmp.eq.s32.totalorder %s40, 0
      %s43 = sadd.s32 %s42, 1
      %s44 = scalar_select %p41, %s42, %s43
      %p47 = pneg %p41
      %p48 = scmp.eq.s32.totalorder %s18, 31
      %p49 = por %p47, %p48
      %p50 = scmp.ne.s32.totalorder %s42, %s45
      %p51 = scmp.eq.s32.totalorder %s18, 0
      %p52 = por %p50, %p51
      %p53 = scmp.ne.s32.totalorder %s42, %s45
      %p54 = scmp.eq.s32.totalorder %s23, 31
      %p55 = por %p53, %p54
      %p56 = scmp.ne.s32.totalorder %s45, %s46
      %p57 = scmp.eq.s32.totalorder %s23, 0
      %p58 = por %p56, %p57
      %p59 = scmp.ne.s32.totalorder %s45, %s46
      %p60 = scmp.eq.s32.totalorder %s24, 31
      %p61 = por %p59, %p60
      %p63 = scmp.ne.s32.totalorder %s46, %s62
      %p64 = scmp.eq.s32.totalorder %s24, 0
      %p65 = por %p63, %p64
      %s66 = sadd.s32 %s26, 1
      %s67 = sadd.s32 %s33, 1
      %s68 = ssub.s32 %s25, %s37
      %s69 = ssub.s32 %s66, %s67
      %s70 = sor.u32 %s68, %s69
      %p71 = scmp.eq.s32.totalorder %s70, 0
      %s73 = sadd.s32 %s72, 1
      %s74 = scalar_select %p71, %s72, %s73
      %p77 = pneg %p71
      %p78 = scmp.eq.s32.totalorder %s18, 31
      %p79 = por %p77, %p78
      %p80 = scmp.ne.s32.totalorder %s72, %s75
      %p81 = scmp.eq.s32.totalorder %s18, 0
      %p82 = por %p80, %p81
      %p83 = scmp.ne.s32.totalorder %s72, %s75
      %p84 = scmp.eq.s32.totalorder %s23, 31
      %p85 = por %p83, %p84
      %p86 = scmp.ne.s32.totalorder %s75, %s76
      %p87 = scmp.eq.s32.totalorder %s23, 0
      %p88 = por %p86, %p87
      %p89 = scmp.ne.s32.totalorder %s75, %s76
      %p90 = scmp.eq.s32.totalorder %s24, 31
      %p91 = por %p89, %p90
      %p93 = scmp.ne.s32.totalorder %s76, %s92
      %p94 = scmp.eq.s32.totalorder %s24, 0
      %p95 = por %p93, %p94
      %s96 = sadd.s32 %s26, 2
      %s97 = sadd.s32 %s33, 2
      %s98 = ssub.s32 %s25, %s37
      %s99 = ssub.s32 %s96, %s97
      %s100 = sor.u32 %s98, %s99
      %p101 = scmp.eq.s32.totalorder %s100, 0
      %s103 = sadd.s32 %s102, 1
      %s104 = scalar_select %p101, %s102, %s103
      %p107 = pneg %p101
      %p108 = scmp.eq.s32.totalorder %s18, 31
      %p109 = por %p107, %p108
      %p110 = scmp.ne.s32.totalorder %s102, %s105
      %p111 = scmp.eq.s32.totalorder %s18, 0
      %p112 = por %p110, %p111
      %p113 = scmp.ne.s32.totalorder %s102, %s105
      %p114 = scmp.eq.s32.totalorder %s23, 31
      %p115 = por %p113, %p114
      %p116 = scmp.ne.s32.totalorder %s105, %s106
      %p117 = scmp.eq.s32.totalorder %s23, 0
      %p118 = por %p116, %p117
      %p119 = scmp.ne.s32.totalorder %s105, %s106
      %p120 = scmp.eq.s32.totalorder %s24, 31
      %p121 = por %p119, %p120
      %p123 = scmp.ne.s32.totalorder %s106, %s122
      %p124 = scmp.eq.s32.totalorder %s24, 0
      %p125 = por %p123, %p124
      %s127 = sadd.s32 %s126, 1
      %p130 = scmp.eq.s32.totalorder %s18, 31
      %p131 = scmp.ne.s32.totalorder %s126, %s128
      %p132 = scmp.eq.s32.totalorder %s18, 0
      %p133 = por %p131, %p132
      %p134 = scmp.ne.s32.totalorder %s126, %s128
      %p135 = scmp.eq.s32.totalorder %s23, 31
      %p136 = por %p134, %p135
      %p137 = scmp.ne.s32.totalorder %s128, %s129
      %p138 = scmp.eq.s32.totalorder %s23, 0
      %p139 = por %p137, %p138
      %p140 = scmp.ne.s32.totalorder %s128, %s129
      %p141 = scmp.eq.s32.totalorder %s24, 31
      %p142 = por %p140, %p141
      %p144 = scmp.ne.s32.totalorder %s129, %s143
      %p145 = scmp.eq.s32.totalorder %s24, 0
      %p146 = por %p144, %p145
      %s147 = ssub.s32 %s25, %s37
      %s148 = ssub.s32 %s26, %s33
      %s149 = sor.u32 %s147, %s148
      %p150 = scmp.eq.s32.totalorder %s149, 0
      %s152 = sadd.s32 %s151, 1
      %s153 = scalar_select %p150, %s151, %s152
      %p156 = pneg %p150
      %p157 = scmp.eq.s32.totalorder %s18, 31
      %p158 = por %p156, %p157
      %p159 = scmp.ne.s32.totalorder %s151, %s154
      %p160 = scmp.eq.s32.totalorder %s18, 0
      %p161 = por %p159, %p160
      %p162 = scmp.ne.s32.totalorder %s151, %s154
      %p163 = scmp.eq.s32.totalorder %s23, 31
      %p164 = por %p162, %p163
      %p165 = scmp.ne.s32.totalorder %s154, %s155
      %p166 = scmp.eq.s32.totalorder %s23, 0
      %p167 = por %p165, %p166
      %p168 = scmp.ne.s32.totalorder %s154, %s155
      %p169 = scmp.eq.s32.totalorder %s24, 31
      %p170 = por %p168, %p169
      %p172 = scmp.ne.s32.totalorder %s155, %s171
      %p173 = scmp.eq.s32.totalorder %s24, 0
      %p174 = por %p172, %p173
      %s175 = ssub.s32 %s25, %s37
      %s176 = ssub.s32 %s26, %s33
      %s177 = sor.u32 %s175, %s176
      %p178 = scmp.eq.s32.totalorder %s177, 0
      %s180 = sadd.s32 %s179, 1
      %s181 = scalar_select %p178, %s179, %s180
      %p184 = pneg %p178
      %p185 = scmp.eq.s32.totalorder %s18, 31
      %p186 = por %p184, %p185
      %p187 = scmp.ne.s32.totalorder %s179, %s182
      %p188 = scmp.eq.s32.totalorder %s18, 0
      %p189 = por %p187, %p188
      %p190 = scmp.ne.s32.totalorder %s179, %s182
      %p191 = scmp.eq.s32.totalorder %s23, 31
      %p192 = por %p190, %p191
      %p193 = scmp.ne.s32.totalorder %s182, %s183
      %p194 = scmp.eq.s32.totalorder %s23, 0
      %p195 = por %p193, %p194
      %p196 = scmp.ne.s32.totalorder %s182, %s183
      %p197 = scmp.eq.s32.totalorder %s24, 31
      %p198 = por %p196, %p197
      %p200 = scmp.ne.s32.totalorder %s183, %s199
      %p201 = scmp.eq.s32.totalorder %s24, 0
      %p202 = por %p200, %p201
      %p203 = scmp.le.s32.totalorder 1, %s18
      %p204 = scmp.lt.s32.totalorder %s18, 33
      %p205 = pnand %p203, %p204
      %p206 = pneg %p205
      // Predicated region
      $region9: #{tpu_custom_call.1} parent=5 // pred_check
        _
      $region10: #{tpu_custom_call.1} parent=5 // pred_check_branch
        %208 = sbr.rel (%p205) target = $region12
      $region11: #{tpu_custom_call.1} parent=5 // pred_region
        %s209 = ssub.s32 %s18, 1
        // Predicated region
        $region13: #{tpu_custom_call.1} parent=11 // pred_check
          %p210 = pneg %p139
        $region14: #{tpu_custom_call.1} parent=11 // pred_check_branch
          %212 = sbr.rel (%p210) target = $region16
        $region15: #{tpu_custom_call.1} parent=11 // pred_region
          _
        $region16: #{tpu_custom_call.1} parent=11 // pred_fallthru
          _
      $region12: #{tpu_custom_call.1} parent=5 // pred_fallthru
        _
      %p213 = scmp.lt.s32.totalorder %s18, 32
      // Predicated region
      $region17: #{tpu_custom_call.1} parent=5 // pred_check
        %p214 = pneg %p213
      $region18: #{tpu_custom_call.1} parent=5 // pred_check_branch
        %216 = sbr.rel (%p214) target = $region20
      $region19: #{tpu_custom_call.1} parent=5 // pred_region
        // Predicated region
        $region21: #{tpu_custom_call.1} parent=19 // pred_check
          %p217 = pneg %p52
        $region22: #{tpu_custom_call.1} parent=19 // pred_check_branch
          %219 = sbr.rel (%p217) target = $region24
        $region23: #{tpu_custom_call.1} parent=19 // pred_region
          %p220 = scmp.lt.s32.totalorder %s25, 1
          %s221 = scalar_select %p220, %s25, 1
          %p222 = scmp.lt.s32.totalorder %s26, 17
          %s223 = scalar_select %p222, %s26, 17
          %s224 = smul.addr %s223, 3
          %s225 = smul.addr %s221, 54
          %s226 = sadd.s32 %s224, %s225
          %s227 = smul.addr %s226, 4
          %s228 = scalar_lea.vmem %s0, %s227
        $region24: #{tpu_custom_call.1} parent=19 // pred_fallthru
          _
        // Predicated region
        $region25: #{tpu_custom_call.1} parent=19 // pred_check
          %p229 = pneg %p82
        $region26: #{tpu_custom_call.1} parent=19 // pred_check_branch
          %231 = sbr.rel (%p229) target = $region28
        $region27: #{tpu_custom_call.1} parent=19 // pred_region
          %s232 = sadd.s32 %s26, 1
          %p233 = scmp.lt.s32.totalorder %s25, 1
          %s234 = scalar_select %p233, %s25, 1
          %p235 = scmp.lt.s32.totalorder %s232, 17
          %s236 = scalar_select %p235, %s232, 17
          %s237 = smul.addr %s236, 3
          %s238 = smul.addr %s234, 54
          %s239 = sadd.s32 %s237, %s238
          %s240 = smul.addr %s239, 4
          %s241 = scalar_lea.vmem %s1, %s240
          %s242 = sadd.s32 %s26, 1
        $region28: #{tpu_custom_call.1} parent=19 // pred_fallthru
          _
        // Predicated region
        $region29: #{tpu_custom_call.1} parent=19 // pred_check
          %p243 = pneg %p112
        $region30: #{tpu_custom_call.1} parent=19 // pred_check_branch
          %245 = sbr.rel (%p243) target = $region32
        $region31: #{tpu_custom_call.1} parent=19 // pred_region
          %s246 = sadd.s32 %s26, 2
          %p247 = scmp.lt.s32.totalorder %s25, 1
          %s248 = scalar_select %p247, %s25, 1
          %p249 = scmp.lt.s32.totalorder %s246, 17
          %s250 = scalar_select %p249, %s246, 17
          %s251 = smul.addr %s250, 3
          %s252 = smul.addr %s248, 54
          %s253 = sadd.s32 %s251, %s252
          %s254 = smul.addr %s253, 4
          %s255 = scalar_lea.vmem %s2, %s254
          %s256 = sadd.s32 %s26, 2
        $region32: #{tpu_custom_call.1} parent=19 // pred_fallthru
          _
      $region20: #{tpu_custom_call.1} parent=5 // pred_fallthru
        _
      %p257 = scmp.le.s32.totalorder 1, %s18
      %p258 = scmp.lt.s32.totalorder %s18, 33
      %p259 = pnand %p257, %p258
      %p260 = pneg %p259
      // Predicated region
      $region33: #{tpu_custom_call.1} parent=5 // pred_check
        _
      $region34: #{tpu_custom_call.1} parent=5 // pred_check_branch
        %262 = sbr.rel (%p259) target = $region36
      $region35: #{tpu_custom_call.1} parent=5 // pred_region
        %s263 = ssub.s32 %s18, 1
        %p264 = scmp.lt.s32.totalorder %s27, 1
        %s265 = scalar_select %p264, %s27, 1
        %p266 = scmp.lt.s32.totalorder %s28, 17
        %s267 = scalar_select %p266, %s28, 17
        %s268 = smul.addr %s267, 3
        %s269 = smul.addr %s265, 54
        %s270 = sadd.s32 %s268, %s269
        %s271 = smul.addr %s270, 4
        %s272 = scalar_lea.vmem %s0, %s271
        %p273 = pneg %p58
        %p274 = pneg %p55
        %s275 = sadd.s32 %s28, 1
        %p276 = scmp.lt.s32.totalorder %s27, 1
        %s277 = scalar_select %p276, %s27, 1
        %p278 = scmp.lt.s32.totalorder %s275, 17
        %s279 = scalar_select %p278, %s275, 17
        %s280 = smul.addr %s279, 3
        %s281 = smul.addr %s277, 54
        %s282 = sadd.s32 %s280, %s281
        %s283 = smul.addr %s282, 4
        %s284 = scalar_lea.vmem %s1, %s283
        %p285 = pneg %p88
        %p286 = pneg %p85
        %s287 = sadd.s32 %s28, 2
        %p288 = scmp.lt.s32.totalorder %s27, 1
        %s289 = scalar_select %p288, %s27, 1
        %p290 = scmp.lt.s32.totalorder %s287, 17
        %s291 = scalar_select %p290, %s287, 17
        %s292 = smul.addr %s291, 3
        %s293 = smul.addr %s289, 54
        %s294 = sadd.s32 %s292, %s293
        %s295 = smul.addr %s294, 4
        %s296 = scalar_lea.vmem %s2, %s295
        %p297 = pneg %p118
        %p298 = pneg %p115
        %p299 = pneg %p139
        %p300 = pneg %p136
        %p301 = pneg %p167
        %p302 = pneg %p164
        %s303 = sand.u32 %s154, 1
        %s304 = scalar_lea.sflag [#allocation3], %s303
        %s305 = sand.u32 %s154, 1
        %s306 = smul.addr %s305, 16
        %s307 = scalar_lea.vmem [#allocation2], %s306
        %p308 = pneg %p195
        %p309 = pneg %p192
        %s310 = sand.u32 %s182, 1
        %s311 = scalar_lea.sflag [#allocation5], %s310
        %s312 = sand.u32 %s182, 1
        %s313 = smul.addr %s312, 2
        %s314 = scalar_lea.vmem [#allocation4], %s313
        %p315 = scmp.lt.s32.totalorder %s27, 1
        %s316 = scalar_select %p315, %s27, 1
        %p317 = scmp.lt.s32.totalorder %s28, 17
        %s318 = scalar_select %p317, %s28, 17
        %s319 = smul.addr %s318, 3
        %s320 = smul.addr %s316, 54
        %s321 = sadd.s32 %s319, %s320
        %s322 = smul.addr %s321, 4
        %s323 = scalar_lea.vmem %s0, %s322
        %s324 = sadd.s32 %s28, 1
        %p325 = scmp.lt.s32.totalorder %s27, 1
        %s326 = scalar_select %p325, %s27, 1
        %p327 = scmp.lt.s32.totalorder %s324, 17
        %s328 = scalar_select %p327, %s324, 17
        %s329 = smul.addr %s328, 3
        %s330 = smul.addr %s326, 54
        %s331 = sadd.s32 %s329, %s330
        %s332 = smul.addr %s331, 4
        %s333 = scalar_lea.vmem %s1, %s332
        %s334 = sadd.s32 %s28, 1
        %s335 = sadd.s32 %s28, 2
        %p336 = scmp.lt.s32.totalorder %s27, 1
        %s337 = scalar_select %p336, %s27, 1
        %p338 = scmp.lt.s32.totalorder %s335, 17
        %s339 = scalar_select %p338, %s335, 17
        %s340 = smul.addr %s339, 3
        %s341 = smul.addr %s337, 54
        %s342 = sadd.s32 %s340, %s341
        %s343 = smul.addr %s342, 4
        %s344 = scalar_lea.vmem %s2, %s343
        %s345 = sadd.s32 %s28, 2
        %v347 = vld [vmem:[%s323] sm:$0xf]
        %v348 = vld [vmem:[%s323 + $0x4] sm:$0xf]
        %v349 = vld [vmem:[%s3] sm:$0xf]
        %v350 = vld [vmem:[%s3 + $0x4] sm:$0xf]
        %v351 = vld [vmem:[%s3 + $0x8] sm:$0xf]
        %v352 = vld [vmem:[%s3 + $0xc] sm:$0xf]
        %v353 = vld [vmem:[%s3 + $0x10] sm:$0xf]
        %v354 = vld [vmem:[%s3 + $0x14] sm:$0xf]
        %v355 = vld [vmem:[%s3 + $0x18] sm:$0xf]
        %v356 = vld [vmem:[%s3 + $0x1c] sm:$0xf]
        %v357 = vld [vmem:[%s3 + $0x20] sm:$0xf]
        %v358 = vld [vmem:[%s3 + $0x24] sm:$0xf]
        %v359 = vld [vmem:[%s3 + $0x28] sm:$0xf]
        %v360 = vld [vmem:[%s3 + $0x2c] sm:$0xf]
        %v361 = vld [vmem:[%s3 + $0x30] sm:$0xf]
        %v362 = vld [vmem:[%s3 + $0x34] sm:$0xf]
        %v363 = vld [vmem:[%s3 + $0x38] sm:$0xf]
        %v364 = vld [vmem:[%s3 + $0x3c] sm:$0xf]
        %v365 = vld [vmem:[%s323 + $0x8] sm:$0x1]
        %s366 = scalar_lea.vmem %s3, 64
        %v367 = vld [vmem:[%s366] sm:$0xf]
        %v368 = vld [vmem:[%s366 + $0x4] sm:$0xf]
        %v369 = vld [vmem:[%s366 + $0x8] sm:$0xf]
        %v370 = vld [vmem:[%s366 + $0xc] sm:$0xf]
        %v371 = vld [vmem:[%s366 + $0x10] sm:$0xf]
        %v372 = vld [vmem:[%s366 + $0x14] sm:$0xf]
        %v373 = vld [vmem:[%s366 + $0x18] sm:$0xf]
        %v374 = vld [vmem:[%s366 + $0x1c] sm:$0xf]
        %v375 = vld [vmem:[%s366 + $0x20] sm:$0xf]
        %v376 = vld [vmem:[%s366 + $0x24] sm:$0xf]
        %v377 = vld [vmem:[%s366 + $0x28] sm:$0xf]
        %v378 = vld [vmem:[%s366 + $0x2c] sm:$0xf]
        %v379 = vld [vmem:[%s366 + $0x30] sm:$0xf]
        %v380 = vld [vmem:[%s366 + $0x34] sm:$0xf]
        %v381 = vld [vmem:[%s366 + $0x38] sm:$0xf]
        %v382 = vld [vmem:[%s366 + $0x3c] sm:$0xf]
        %v386 = vunpack.c.l.b16 %v347
        %v387 = vunpack.c.l.b16 %v348
        %v388 = vunpack.c.l.b16 %v365
        %v389 = vpack.c.b16 %v387, %v386
        %v390 = vpack.c.b16 %v388, %v388
        %vm391 = vsmask.f32 7424
        %v393 = vshrl.u32 %v389, 16
        %v395 = vshll.u32 %v389, 16
        %v397 = vrot.slane %v395, 1
        %v398 = vor.u32 %v393, %v397
        %v400 = vshll.u32 %v390, 16
        %v402 = vrot.slane %v400, 1
        %v403 = vsel %vm391, %v398, %v402
        %v421 = vunpack.c.l.b16 %v367
        %v422 = vunpack.c.l.b16 %v368
        %v423 = vunpack.c.l.b16 %v369
        %v424 = vunpack.c.l.b16 %v370
        %v425 = vunpack.c.l.b16 %v371
        %v426 = vunpack.c.l.b16 %v372
        %v427 = vunpack.c.l.b16 %v373
        %v428 = vunpack.c.l.b16 %v374
        %v429 = vunpack.c.l.b16 %v375
        %v430 = vunpack.c.l.b16 %v376
        %v431 = vunpack.c.l.b16 %v377
        %v432 = vunpack.c.l.b16 %v378
        %v433 = vunpack.c.l.b16 %v379
        %v434 = vunpack.c.l.b16 %v380
        %v435 = vunpack.c.l.b16 %v381
        %v436 = vunpack.c.l.b16 %v382
        %v437 = vpack.c.b16 %v422, %v421
        %v438 = vpack.c.b16 %v424, %v423
        %v439 = vpack.c.b16 %v426, %v425
        %v440 = vpack.c.b16 %v428, %v427
        %v441 = vpack.c.b16 %v430, %v429
        %v442 = vpack.c.b16 %v432, %v431
        %v443 = vpack.c.b16 %v434, %v433
        %v444 = vpack.c.b16 %v436, %v435
        %453 = vmatprep.subr.bf16.mxu0 0
        %454 = vmatpush1.bf16.msra.mxu0 %v437
        %455 = vmatprep.subr.bf16.mxu0 0
        %456 = vmatpush1.bf16.msra.mxu0 %v438
        %457 = vmatprep.subr.bf16.mxu0 0
        %458 = vmatpush1.bf16.msra.mxu0 %v439
        %459 = vmatprep.subr.bf16.mxu0 0
        %460 = vmatpush1.bf16.msra.mxu0 %v440
        %461 = vmatprep.subr.bf16.mxu0 0
        %462 = vmatpush1.bf16.msra.mxu0 %v441
        %463 = vmatprep.subr.bf16.mxu0 0
        %464 = vmatpush1.bf16.msra.mxu0 %v442
        %465 = vmatprep.subr.bf16.mxu0 0
        %466 = vmatpush1.bf16.msra.mxu0 %v443
        %467 = vmatprep.subr.bf16.mxu0 0
        %468 = vmatpush1.bf16.msra.mxu0 %v444
        %469 = vmatprep.subr.bf16.mxu0 0
        %470 = vmatpush1.bf16.msra.mxu0 0
        %471 = vmatprep.subr.bf16.mxu0 0
        %472 = vmatpush1.bf16.msra.mxu0 0
        %473 = vmatprep.subr.bf16.mxu0 0
        %474 = vmatpush1.bf16.msra.mxu0 0
        %475 = vmatprep.subr.bf16.mxu0 0
        %476 = vmatpush1.bf16.msra.mxu0 0
        %477 = vmatprep.subr.bf16.mxu0 0
        %478 = vmatpush1.bf16.msra.mxu0 0
        %479 = vmatprep.subr.bf16.mxu0 0
        %480 = vmatpush1.bf16.msra.mxu0 0
        %481 = vmatprep.subr.bf16.mxu0 0
        %482 = vmatpush1.bf16.msra.mxu0 0
        %483 = vmatprep.subr.bf16.mxu0 0
        %484 = vmatpush1.bf16.msra.mxu0 0
        %485 = vmatprep.mubr.bf16.mxu0 0
        %486 = vmatmul.mubr.bf16.gmra.mrb[0].mxu0 %v403
        %v487 = vpop.f32.mrb[0].mxu0
        %v488 = vadd.f32 0.0, %v487
        %v489 = vpop.f32.mrb[0].mxu0
        %v490 = vpop.f32.mrb[0].mxu0
        %v491 = vadd.f32 0.0, %v490
        %v492 = vpop.f32.mrb[0].mxu0
        %493 = vdwg.mxu0
        %v511 = vunpack.c.l.b16 %v349
        %v512 = vunpack.c.l.b16 %v350
        %v513 = vunpack.c.l.b16 %v351
        %v514 = vunpack.c.l.b16 %v352
        %v515 = vunpack.c.l.b16 %v353
        %v516 = vunpack.c.l.b16 %v354
        %v517 = vunpack.c.l.b16 %v355
        %v518 = vunpack.c.l.b16 %v356
        %v519 = vunpack.c.l.b16 %v357
        %v520 = vunpack.c.l.b16 %v358
        %v521 = vunpack.c.l.b16 %v359
        %v522 = vunpack.c.l.b16 %v360
        %v523 = vunpack.c.l.b16 %v361
        %v524 = vunpack.c.l.b16 %v362
        %v525 = vunpack.c.l.b16 %v363
        %v526 = vunpack.c.l.b16 %v364
        %v527 = vpack.c.b16 %v512, %v511
        %v528 = vpack.c.b16 %v514, %v513
        %v529 = vpack.c.b16 %v516, %v515
        %v530 = vpack.c.b16 %v518, %v517
        %v531 = vpack.c.b16 %v520, %v519
        %v532 = vpack.c.b16 %v522, %v521
        %v533 = vpack.c.b16 %v524, %v523
        %v534 = vpack.c.b16 %v526, %v525
        %543 = vmatprep.subr.bf16.mxu0 0
        %544 = vmatpush1.bf16.msra.mxu0 %v527
        %545 = vmatprep.subr.bf16.mxu0 0
        %546 = vmatpush1.bf16.msra.mxu0 %v528
        %547 = vmatprep.subr.bf16.mxu0 0
        %548 = vmatpush1.bf16.msra.mxu0 %v529
        %549 = vmatprep.subr.bf16.mxu0 0
        %550 = vmatpush1.bf16.msra.mxu0 %v530
        %551 = vmatprep.subr.bf16.mxu0 0
        %552 = vmatpush1.bf16.msra.mxu0 %v531
        %553 = vmatprep.subr.bf16.mxu0 0
        %554 = vmatpush1.bf16.msra.mxu0 %v532
        %555 = vmatprep.subr.bf16.mxu0 0
        %556 = vmatpush1.bf16.msra.mxu0 %v533
        %557 = vmatprep.subr.bf16.mxu0 0
        %558 = vmatpush1.bf16.msra.mxu0 %v534
        %559 = vmatprep.subr.bf16.mxu0 0
        %560 = vmatpush1.bf16.msra.mxu0 0
        %561 = vmatprep.subr.bf16.mxu0 0
        %562 = vmatpush1.bf16.msra.mxu0 0
        %563 = vmatprep.subr.bf16.mxu0 0
        %564 = vmatpush1.bf16.msra.mxu0 0
        %565 = vmatprep.subr.bf16.mxu0 0
        %566 = vmatpush1.bf16.msra.mxu0 0
        %567 = vmatprep.subr.bf16.mxu0 0
        %568 = vmatpush1.bf16.msra.mxu0 0
        %569 = vmatprep.subr.bf16.mxu0 0
        %570 = vmatpush1.bf16.msra.mxu0 0
        %571 = vmatprep.subr.bf16.mxu0 0
        %572 = vmatpush1.bf16.msra.mxu0 0
        %573 = vmatprep.subr.bf16.mxu0 0
        %574 = vmatpush1.bf16.msra.mxu0 0
        %575 = vmatprep.mubr.bf16.mxu0 0
        %576 = vmatmul.mubr.bf16.gmra.mrb[0].mxu0 %v389
        %v577 = vpop.f32.mrb[0].mxu0
        %v578 = vadd.f32 %v488, %v577
        %v579 = vpop.f32.mrb[0].mxu0
        %v580 = vpop.f32.mrb[0].mxu0
        %v581 = vadd.f32 %v491, %v580
        %v582 = vpop.f32.mrb[0].mxu0
        %583 = vdwg.mxu0
        %v584 = vld [vmem:[%s323] sm:$0xe]
        %s585 = scalar_lea.vmem %s3, 128
        %v586 = vld [vmem:[%s585] sm:$0xf]
        %v587 = vld [vmem:[%s585 + $0x4] sm:$0xf]
        %v588 = vld [vmem:[%s585 + $0x8] sm:$0xf]
        %v589 = vld [vmem:[%s585 + $0xc] sm:$0xf]
        %v590 = vld [vmem:[%s585 + $0x10] sm:$0xf]
        %v591 = vld [vmem:[%s585 + $0x14] sm:$0xf]
        %v592 = vld [vmem:[%s585 + $0x18] sm:$0xf]
        %v593 = vld [vmem:[%s585 + $0x1c] sm:$0xf]
        %v594 = vld [vmem:[%s585 + $0x20] sm:$0xf]
        %v595 = vld [vmem:[%s585 + $0x24] sm:$0xf]
        %v596 = vld [vmem:[%s585 + $0x28] sm:$0xf]
        %v597 = vld [vmem:[%s585 + $0x2c] sm:$0xf]
        %v598 = vld [vmem:[%s585 + $0x30] sm:$0xf]
        %v599 = vld [vmem:[%s585 + $0x34] sm:$0xf]
        %v600 = vld [vmem:[%s585 + $0x38] sm:$0xf]
        %v601 = vld [vmem:[%s585 + $0x3c] sm:$0xf]
        %v603 = vunpack.c.l.b16 %v584
        %v604 = vpack.c.b16 %v387, %v603
        %vm605 = vcmask 1046528
        %v606 = vrot.slane %v604, 1
        %v607 = vrot.slane %v390, 1
        %v608 = vsel %vm605, %v606, %v607
        %v626 = vunpack.c.l.b16 %v586
        %v627 = vunpack.c.l.b16 %v587
        %v628 = vunpack.c.l.b16 %v588
        %v629 = vunpack.c.l.b16 %v589
        %v630 = vunpack.c.l.b16 %v590
        %v631 = vunpack.c.l.b16 %v591
        %v632 = vunpack.c.l.b16 %v592
        %v633 = vunpack.c.l.b16 %v593
        %v634 = vunpack.c.l.b16 %v594
        %v635 = vunpack.c.l.b16 %v595
        %v636 = vunpack.c.l.b16 %v596
        %v637 = vunpack.c.l.b16 %v597
        %v638 = vunpack.c.l.b16 %v598
        %v639 = vunpack.c.l.b16 %v599
        %v640 = vunpack.c.l.b16 %v600
        %v641 = vunpack.c.l.b16 %v601
        %v642 = vpack.c.b16 %v627, %v626
        %v643 = vpack.c.b16 %v629, %v628
        %v644 = vpack.c.b16 %v631, %v630
        %v645 = vpack.c.b16 %v633, %v632
        %v646 = vpack.c.b16 %v635, %v634
        %v647 = vpack.c.b16 %v637, %v636
        %v648 = vpack.c.b16 %v639, %v638
        %v649 = vpack.c.b16 %v641, %v640
        %658 = vmatprep.subr.bf16.mxu0 0
        %659 = vmatpush1.bf16.msra.mxu0 %v642
        %660 = vmatprep.subr.bf16.mxu0 0
        %661 = vmatpush1.bf16.msra.mxu0 %v643
        %662 = vmatprep.subr.bf16.mxu0 0
        %663 = vmatpush1.bf16.msra.mxu0 %v644
        %664 = vmatprep.subr.bf16.mxu0 0
        %665 = vmatpush1.bf16.msra.mxu0 %v645
        %666 = vmatprep.subr.bf16.mxu0 0
        %667 = vmatpush1.bf16.msra.mxu0 %v646
        %668 = vmatprep.subr.bf16.mxu0 0
        %669 = vmatpush1.bf16.msra.mxu0 %v647
        %670 = vmatprep.subr.bf16.mxu0 0
        %671 = vmatpush1.bf16.msra.mxu0 %v648
        %672 = vmatprep.subr.bf16.mxu0 0
        %673 = vmatpush1.bf16.msra.mxu0 %v649
        %674 = vmatprep.subr.bf16.mxu0 0
        %675 = vmatpush1.bf16.msra.mxu0 0
        %676 = vmatprep.subr.bf16.mxu0 0
        %677 = vmatpush1.bf16.msra.mxu0 0
        %678 = vmatprep.subr.bf16.mxu0 0
        %679 = vmatpush1.bf16.msra.mxu0 0
        %680 = vmatprep.subr.bf16.mxu0 0
        %681 = vmatpush1.bf16.msra.mxu0 0
        %682 = vmatprep.subr.bf16.mxu0 0
        %683 = vmatpush1.bf16.msra.mxu0 0
        %684 = vmatprep.subr.bf16.mxu0 0
        %685 = vmatpush1.bf16.msra.mxu0 0
        %686 = vmatprep.subr.bf16.mxu0 0
        %687 = vmatpush1.bf16.msra.mxu0 0
        %688 = vmatprep.subr.bf16.mxu0 0
        %689 = vmatpush1.bf16.msra.mxu0 0
        %690 = vmatprep.mubr.bf16.mxu0 0
        %691 = vmatmul.mubr.bf16.gmra.mrb[0].mxu0 %v608
        %v692 = vpop.f32.mrb[0].mxu0
        %v693 = vadd.f32 0.0, %v692
        %v694 = vpop.f32.mrb[0].mxu0
        %v695 = vpop.f32.mrb[0].mxu0
        %v696 = vadd.f32 0.0, %v695
        %v697 = vpop.f32.mrb[0].mxu0
        %698 = vdwg.mxu0
        %v699 = vadd.f32 %v578, %v693
        %v700 = vadd.f32 %v581, %v696
        %v701 = vld [vmem:[%s333] sm:$0xf]
        %v702 = vld [vmem:[%s333 + $0x4] sm:$0xf]
        %s703 = scalar_lea.vmem %s3, 192
        %v704 = vld [vmem:[%s703] sm:$0xf]
        %v705 = vld [vmem:[%s703 + $0x4] sm:$0xf]
        %v706 = vld [vmem:[%s703 + $0x8] sm:$0xf]
        %v707 = vld [vmem:[%s703 + $0xc] sm:$0xf]
        %v708 = vld [vmem:[%s703 + $0x10] sm:$0xf]
        %v709 = vld [vmem:[%s703 + $0x14] sm:$0xf]
        %v710 = vld [vmem:[%s703 + $0x18] sm:$0xf]
        %v711 = vld [vmem:[%s703 + $0x1c] sm:$0xf]
        %v712 = vld [vmem:[%s703 + $0x20] sm:$0xf]
        %v713 = vld [vmem:[%s703 + $0x24] sm:$0xf]
        %v714 = vld [vmem:[%s703 + $0x28] sm:$0xf]
        %v715 = vld [vmem:[%s703 + $0x2c] sm:$0xf]
        %v716 = vld [vmem:[%s703 + $0x30] sm:$0xf]
        %v717 = vld [vmem:[%s703 + $0x34] sm:$0xf]
        %v718 = vld [vmem:[%s703 + $0x38] sm:$0xf]
        %v719 = vld [vmem:[%s703 + $0x3c] sm:$0xf]
        %v722 = vunpack.c.l.b16 %v701
        %v723 = vunpack.c.l.b16 %v702
        %v724 = vpack.c.b16 %v723, %v722
        %v742 = vunpack.c.l.b16 %v704
        %v743 = vunpack.c.l.b16 %v705
        %v744 = vunpack.c.l.b16 %v706
        %v745 = vunpack.c.l.b16 %v707
        %v746 = vunpack.c.l.b16 %v708
        %v747 = vunpack.c.l.b16 %v709
        %v748 = vunpack.c.l.b16 %v710
        %v749 = vunpack.c.l.b16 %v711
        %v750 = vunpack.c.l.b16 %v712
        %v751 = vunpack.c.l.b16 %v713
        %v752 = vunpack.c.l.b16 %v714
        %v753 = vunpack.c.l.b16 %v715
        %v754 = vunpack.c.l.b16 %v716
        %v755 = vunpack.c.l.b16 %v717
        %v756 = vunpack.c.l.b16 %v718
        %v757 = vunpack.c.l.b16 %v719
        %v758 = vpack.c.b16 %v743, %v742
        %v759 = vpack.c.b16 %v745, %v744
        %v760 = vpack.c.b16 %v747, %v746
        %v761 = vpack.c.b16 %v749, %v748
        %v762 = vpack.c.b16 %v751, %v750
        %v763 = vpack.c.b16 %v753, %v752
        %v764 = vpack.c.b16 %v755, %v754
        %v765 = vpack.c.b16 %v757, %v756
        %774 = vmatprep.subr.bf16.mxu0 0
        %775 = vmatpush1.bf16.msra.mxu0 %v758
        %776 = vmatprep.subr.bf16.mxu0 0
        %777 = vmatpush1.bf16.msra.mxu0 %v759
        %778 = vmatprep.subr.bf16.mxu0 0
        %779 = vmatpush1.bf16.msra.mxu0 %v760
        %780 = vmatprep.subr.bf16.mxu0 0
        %781 = vmatpush1.bf16.msra.mxu0 %v761
        %782 = vmatprep.subr.bf16.mxu0 0
        %783 = vmatpush1.bf16.msra.mxu0 %v762
        %784 = vmatprep.subr.bf16.mxu0 0
        %785 = vmatpush1.bf16.msra.mxu0 %v763
        %786 = vmatprep.subr.bf16.mxu0 0
        %787 = vmatpush1.bf16.msra.mxu0 %v764
        %788 = vmatprep.subr.bf16.mxu0 0
        %789 = vmatpush1.bf16.msra.mxu0 %v765
        %790 = vmatprep.subr.bf16.mxu0 0
        %791 = vmatpush1.bf16.msra.mxu0 0
        %792 = vmatprep.subr.bf16.mxu0 0
        %793 = vmatpush1.bf16.msra.mxu0 0
        %794 = vmatprep.subr.bf16.mxu0 0
        %795 = vmatpush1.bf16.msra.mxu0 0
        %796 = vmatprep.subr.bf16.mxu0 0
        %797 = vmatpush1.bf16.msra.mxu0 0
        %798 = vmatprep.subr.bf16.mxu0 0
        %799 = vmatpush1.bf16.msra.mxu0 0
        %800 = vmatprep.subr.bf16.mxu0 0
        %801 = vmatpush1.bf16.msra.mxu0 0
        %802 = vmatprep.subr.bf16.mxu0 0
        %803 = vmatpush1.bf16.msra.mxu0 0
        %804 = vmatprep.subr.bf16.mxu0 0
        %805 = vmatpush1.bf16.msra.mxu0 0
        %806 = vmatprep.mubr.bf16.mxu0 0
        %807 = vmatmul.mubr.bf16.gmra.mrb[0].mxu0 %v724
        %v808 = vpop.f32.mrb[0].mxu0
        %v809 = vadd.f32 0.0, %v808
        %v810 = vpop.f32.mrb[0].mxu0
        %v811 = vpop.f32.mrb[0].mxu0
        %v812 = vadd.f32 0.0, %v811
        %v813 = vpop.f32.mrb[0].mxu0
        %814 = vdwg.mxu0
        %v815 = vadd.f32 %v699, %v809
        %v816 = vadd.f32 %v700, %v812
        %v817 = vld [vmem:[%s333] sm:$0xf]
        %v818 = vld [vmem:[%s333 + $0x4] sm:$0xf]
        %v819 = vld [vmem:[%s333 + $0x8] sm:$0x1]
        %s820 = scalar_lea.vmem %s3, 256
        %v821 = vld [vmem:[%s820] sm:$0xf]
        %v822 = vld [vmem:[%s820 + $0x4] sm:$0xf]
        %v823 = vld [vmem:[%s820 + $0x8] sm:$0xf]
        %v824 = vld [vmem:[%s820 + $0xc] sm:$0xf]
        %v825 = vld [vmem:[%s820 + $0x10] sm:$0xf]
        %v826 = vld [vmem:[%s820 + $0x14] sm:$0xf]
        %v827 = vld [vmem:[%s820 + $0x18] sm:$0xf]
        %v828 = vld [vmem:[%s820 + $0x1c] sm:$0xf]
        %v829 = vld [vmem:[%s820 + $0x20] sm:$0xf]
        %v830 = vld [vmem:[%s820 + $0x24] sm:$0xf]
        %v831 = vld [vmem:[%s820 + $0x28] sm:$0xf]
        %v832 = vld [vmem:[%s820 + $0x2c] sm:$0xf]
        %v833 = vld [vmem:[%s820 + $0x30] sm:$0xf]
        %v834 = vld [vmem:[%s820 + $0x34] sm:$0xf]
        %v835 = vld [vmem:[%s820 + $0x38] sm:$0xf]
        %v836 = vld [vmem:[%s820 + $0x3c] sm:$0xf]
        %v840 = vunpack.c.l.b16 %v817
        %v841 = vunpack.c.l.b16 %v818
        %v842 = vunpack.c.l.b16 %v819
        %v843 = vpack.c.b16 %v841, %v840
        %v844 = vpack.c.b16 %v842, %v842
        %v846 = vshrl.u32 %v843, 16
        %v848 = vshll.u32 %v843, 16
        %v850 = vrot.slane %v848, 1
        %v851 = vor.u32 %v846, %v850
        %v853 = vshll.u32 %v844, 16
        %v855 = vrot.slane %v853, 1
        %v856 = vsel %vm391, %v851, %v855
        %v874 = vunpack.c.l.b16 %v821
        %v875 = vunpack.c.l.b16 %v822
        %v876 = vunpack.c.l.b16 %v823
        %v877 = vunpack.c.l.b16 %v824
        %v878 = vunpack.c.l.b16 %v825
        %v879 = vunpack.c.l.b16 %v826
        %v880 = vunpack.c.l.b16 %v827
        %v881 = vunpack.c.l.b16 %v828
        %v882 = vunpack.c.l.b16 %v829
        %v883 = vunpack.c.l.b16 %v830
        %v884 = vunpack.c.l.b16 %v831
        %v885 = vunpack.c.l.b16 %v832
        %v886 = vunpack.c.l.b16 %v833
        %v887 = vunpack.c.l.b16 %v834
        %v888 = vunpack.c.l.b16 %v835
        %v889 = vunpack.c.l.b16 %v836
        %v890 = vpack.c.b16 %v875, %v874
        %v891 = vpack.c.b16 %v877, %v876
        %v892 = vpack.c.b16 %v879, %v878
        %v893 = vpack.c.b16 %v881, %v880
        %v894 = vpack.c.b16 %v883, %v882
        %v895 = vpack.c.b16 %v885, %v884
        %v896 = vpack.c.b16 %v887, %v886
        %v897 = vpack.c.b16 %v889, %v888
        %906 = vmatprep.subr.bf16.mxu0 0
        %907 = vmatpush1.bf16.msra.mxu0 %v890
        %908 = vmatprep.subr.bf16.mxu0 0
        %909 = vmatpush1.bf16.msra.mxu0 %v891
        %910 = vmatprep.subr.bf16.mxu0 0
        %911 = vmatpush1.bf16.msra.mxu0 %v892
        %912 = vmatprep.subr.bf16.mxu0 0
        %913 = vmatpush1.bf16.msra.mxu0 %v893
        %914 = vmatprep.subr.bf16.mxu0 0
        %915 = vmatpush1.bf16.msra.mxu0 %v894
        %916 = vmatprep.subr.bf16.mxu0 0
        %917 = vmatpush1.bf16.msra.mxu0 %v895
        %918 = vmatprep.subr.bf16.mxu0 0
        %919 = vmatpush1.bf16.msra.mxu0 %v896
        %920 = vmatprep.subr.bf16.mxu0 0
        %921 = vmatpush1.bf16.msra.mxu0 %v897
        %922 = vmatprep.subr.bf16.mxu0 0
        %923 = vmatpush1.bf16.msra.mxu0 0
        %924 = vmatprep.subr.bf16.mxu0 0
        %925 = vmatpush1.bf16.msra.mxu0 0
        %926 = vmatprep.subr.bf16.mxu0 0
        %927 = vmatpush1.bf16.msra.mxu0 0
        %928 = vmatprep.subr.bf16.mxu0 0
        %929 = vmatpush1.bf16.msra.mxu0 0
        %930 = vmatprep.subr.bf16.mxu0 0
        %931 = vmatpush1.bf16.msra.mxu0 0
        %932 = vmatprep.subr.bf16.mxu0 0
        %933 = vmatpush1.bf16.msra.mxu0 0
        %934 = vmatprep.subr.bf16.mxu0 0
        %935 = vmatpush1.bf16.msra.mxu0 0
        %936 = vmatprep.subr.bf16.mxu0 0
        %937 = vmatpush1.bf16.msra.mxu0 0
        %938 = vmatprep.mubr.bf16.mxu0 0
        %939 = vmatmul.mubr.bf16.gmra.mrb[0].mxu0 %v856
        %v940 = vpop.f32.mrb[0].mxu0
        %v941 = vadd.f32 0.0, %v940
        %v942 = vpop.f32.mrb[0].mxu0
        %v943 = vpop.f32.mrb[0].mxu0
        %v944 = vadd.f32 0.0, %v943
        %v945 = vpop.f32.mrb[0].mxu0
        %946 = vdwg.mxu0
        %v947 = vadd.f32 %v815, %v941
        %v948 = vadd.f32 %v816, %v944
        %v949 = vld [vmem:[%s333] sm:$0xe]
        %s950 = scalar_lea.vmem %s3, 320
        %v951 = vld [vmem:[%s950] sm:$0xf]
        %v952 = vld [vmem:[%s950 + $0x4] sm:$0xf]
        %v953 = vld [vmem:[%s950 + $0x8] sm:$0xf]
        %v954 = vld [vmem:[%s950 + $0xc] sm:$0xf]
        %v955 = vld [vmem:[%s950 + $0x10] sm:$0xf]
        %v956 = vld [vmem:[%s950 + $0x14] sm:$0xf]
        %v957 = vld [vmem:[%s950 + $0x18] sm:$0xf]
        %v958 = vld [vmem:[%s950 + $0x1c] sm:$0xf]
        %v959 = vld [vmem:[%s950 + $0x20] sm:$0xf]
        %v960 = vld [vmem:[%s950 + $0x24] sm:$0xf]
        %v961 = vld [vmem:[%s950 + $0x28] sm:$0xf]
        %v962 = vld [vmem:[%s950 + $0x2c] sm:$0xf]
        %v963 = vld [vmem:[%s950 + $0x30] sm:$0xf]
        %v964 = vld [vmem:[%s950 + $0x34] sm:$0xf]
        %v965 = vld [vmem:[%s950 + $0x38] sm:$0xf]
        %v966 = vld [vmem:[%s950 + $0x3c] sm:$0xf]
        %v968 = vunpack.c.l.b16 %v949
        %v969 = vpack.c.b16 %v841, %v968
        %v970 = vrot.slane %v969, 1
        %v971 = vrot.slane %v844, 1
        %v972 = vsel %vm605, %v970, %v971
        %v990 = vunpack.c.l.b16 %v951
        %v991 = vunpack.c.l.b16 %v952
        %v992 = vunpack.c.l.b16 %v953
        %v993 = vunpack.c.l.b16 %v954
        %v994 = vunpack.c.l.b16 %v955
        %v995 = vunpack.c.l.b16 %v956
        %v996 = vunpack.c.l.b16 %v957
        %v997 = vunpack.c.l.b16 %v958
        %v998 = vunpack.c.l.b16 %v959
        %v999 = vunpack.c.l.b16 %v960
        %v1000 = vunpack.c.l.b16 %v961
        %v1001 = vunpack.c.l.b16 %v962
        %v1002 = vunpack.c.l.b16 %v963
        %v1003 = vunpack.c.l.b16 %v964
        %v1004 = vunpack.c.l.b16 %v965
        %v1005 = vunpack.c.l.b16 %v966
        %v1006 = vpack.c.b16 %v991, %v990
        %v1007 = vpack.c.b16 %v993, %v992
        %v1008 = vpack.c.b16 %v995, %v994
        %v1009 = vpack.c.b16 %v997, %v996
        %v1010 = vpack.c.b16 %v999, %v998
        %v1011 = vpack.c.b16 %v1001, %v1000
        %v1012 = vpack.c.b16 %v1003, %v1002
        %v1013 = vpack.c.b16 %v1005, %v1004
        %1022 = vmatprep.subr.bf16.mxu0 0
        %1023 = vmatpush1.bf16.msra.mxu0 %v1006
        %1024 = vmatprep.subr.bf16.mxu0 0
        %1025 = vmatpush1.bf16.msra.mxu0 %v1007
        %1026 = vmatprep.subr.bf16.mxu0 0
        %1027 = vmatpush1.bf16.msra.mxu0 %v1008
        %1028 = vmatprep.subr.bf16.mxu0 0
        %1029 = vmatpush1.bf16.msra.mxu0 %v1009
        %1030 = vmatprep.subr.bf16.mxu0 0
        %1031 = vmatpush1.bf16.msra.mxu0 %v1010
        %1032 = vmatprep.subr.bf16.mxu0 0
        %1033 = vmatpush1.bf16.msra.mxu0 %v1011
        %1034 = vmatprep.subr.bf16.mxu0 0
        %1035 = vmatpush1.bf16.msra.mxu0 %v1012
        %1036 = vmatprep.subr.bf16.mxu0 0
        %1037 = vmatpush1.bf16.msra.mxu0 %v1013
        %1038 = vmatprep.subr.bf16.mxu0 0
        %1039 = vmatpush1.bf16.msra.mxu0 0
        %1040 = vmatprep.subr.bf16.mxu0 0
        %1041 = vmatpush1.bf16.msra.mxu0 0
        %1042 = vmatprep.subr.bf16.mxu0 0
        %1043 = vmatpush1.bf16.msra.mxu0 0
        %1044 = vmatprep.subr.bf16.mxu0 0
        %1045 = vmatpush1.bf16.msra.mxu0 0
        %1046 = vmatprep.subr.bf16.mxu0 0
        %1047 = vmatpush1.bf16.msra.mxu0 0
        %1048 = vmatprep.subr.bf16.mxu0 0
        %1049 = vmatpush1.bf16.msra.mxu0 0
        %1050 = vmatprep.subr.bf16.mxu0 0
        %1051 = vmatpush1.bf16.msra.mxu0 0
        %1052 = vmatprep.subr.bf16.mxu0 0
        %1053 = vmatpush1.bf16.msra.mxu0 0
        %1054 = vmatprep.mubr.bf16.mxu0 0
        %1055 = vmatmul.mubr.bf16.gmra.mrb[0].mxu0 %v972
        %v1056 = vpop.f32.mrb[0].mxu0
        %v1057 = vadd.f32 0.0, %v1056
        %v1058 = vpop.f32.mrb[0].mxu0
        %v1059 = vpop.f32.mrb[0].mxu0
        %v1060 = vadd.f32 0.0, %v1059
        %v1061 = vpop.f32.mrb[0].mxu0
        %1062 = vdwg.mxu0
        %v1063 = vadd.f32 %v947, %v1057
        %v1064 = vadd.f32 %v948, %v1060
        %v1065 = vld [vmem:[%s344] sm:$0xf]
        %v1066 = vld [vmem:[%s344 + $0x4] sm:$0xf]
        %s1067 = scalar_lea.vmem %s3, 384
        %v1068 = vld [vmem:[%s1067] sm:$0xf]
        %v1069 = vld [vmem:[%s1067 + $0x4] sm:$0xf]
        %v1070 = vld [vmem:[%s1067 + $0x8] sm:$0xf]
        %v1071 = vld [vmem:[%s1067 + $0xc] sm:$0xf]
        %v1072 = vld [vmem:[%s1067 + $0x10] sm:$0xf]
        %v1073 = vld [vmem:[%s1067 + $0x14] sm:$0xf]
        %v1074 = vld [vmem:[%s1067 + $0x18] sm:$0xf]
        %v1075 = vld [vmem:[%s1067 + $0x1c] sm:$0xf]
        %v1076 = vld [vmem:[%s1067 + $0x20] sm:$0xf]
        %v1077 = vld [vmem:[%s1067 + $0x24] sm:$0xf]
        %v1078 = vld [vmem:[%s1067 + $0x28] sm:$0xf]
        %v1079 = vld [vmem:[%s1067 + $0x2c] sm:$0xf]
        %v1080 = vld [vmem:[%s1067 + $0x30] sm:$0xf]
        %v1081 = vld [vmem:[%s1067 + $0x34] sm:$0xf]
        %v1082 = vld [vmem:[%s1067 + $0x38] sm:$0xf]
        %v1083 = vld [vmem:[%s1067 + $0x3c] sm:$0xf]
        %v1086 = vunpack.c.l.b16 %v1065
        %v1087 = vunpack.c.l.b16 %v1066
        %v1088 = vpack.c.b16 %v1087, %v1086
        %v1106 = vunpack.c.l.b16 %v1068
        %v1107 = vunpack.c.l.b16 %v1069
        %v1108 = vunpack.c.l.b16 %v1070
        %v1109 = vunpack.c.l.b16 %v1071
        %v1110 = vunpack.c.l.b16 %v1072
        %v1111 = vunpack.c.l.b16 %v1073
        %v1112 = vunpack.c.l.b16 %v1074
        %v1113 = vunpack.c.l.b16 %v1075
        %v1114 = vunpack.c.l.b16 %v1076
        %v1115 = vunpack.c.l.b16 %v1077
        %v1116 = vunpack.c.l.b16 %v1078
        %v1117 = vunpack.c.l.b16 %v1079
        %v1118 = vunpack.c.l.b16 %v1080
        %v1119 = vunpack.c.l.b16 %v1081
        %v1120 = vunpack.c.l.b16 %v1082
        %v1121 = vunpack.c.l.b16 %v1083
        %v1122 = vpack.c.b16 %v1107, %v1106
        %v1123 = vpack.c.b16 %v1109, %v1108
        %v1124 = vpack.c.b16 %v1111, %v1110
        %v1125 = vpack.c.b16 %v1113, %v1112
        %v1126 = vpack.c.b16 %v1115, %v1114
        %v1127 = vpack.c.b16 %v1117, %v1116
        %v1128 = vpack.c.b16 %v1119, %v1118
        %v1129 = vpack.c.b16 %v1121, %v1120
        %1138 = vmatprep.subr.bf16.mxu0 0
        %1139 = vmatpush1.bf16.msra.mxu0 %v1122
        %1140 = vmatprep.subr.bf16.mxu0 0
        %1141 = vmatpush1.bf16.msra.mxu0 %v1123
        %1142 = vmatprep.subr.bf16.mxu0 0
        %1143 = vmatpush1.bf16.msra.mxu0 %v1124
        %1144 = vmatprep.subr.bf16.mxu0 0
        %1145 = vmatpush1.bf16.msra.mxu0 %v1125
        %1146 = vmatprep.subr.bf16.mxu0 0
        %1147 = vmatpush1.bf16.msra.mxu0 %v1126
        %1148 = vmatprep.subr.bf16.mxu0 0
        %1149 = vmatpush1.bf16.msra.mxu0 %v1127
        %1150 = vmatprep.subr.bf16.mxu0 0
        %1151 = vmatpush1.bf16.msra.mxu0 %v1128
        %1152 = vmatprep.subr.bf16.mxu0 0
        %1153 = vmatpush1.bf16.msra.mxu0 %v1129
        %1154 = vmatprep.subr.bf16.mxu0 0
        %1155 = vmatpush1.bf16.msra.mxu0 0
        %1156 = vmatprep.subr.bf16.mxu0 0
        %1157 = vmatpush1.bf16.msra.mxu0 0
        %1158 = vmatprep.subr.bf16.mxu0 0
        %1159 = vmatpush1.bf16.msra.mxu0 0
        %1160 = vmatprep.subr.bf16.mxu0 0
        %1161 = vmatpush1.bf16.msra.mxu0 0
        %1162 = vmatprep.subr.bf16.mxu0 0
        %1163 = vmatpush1.bf16.msra.mxu0 0
        %1164 = vmatprep.subr.bf16.mxu0 0
        %1165 = vmatpush1.bf16.msra.mxu0 0
        %1166 = vmatprep.subr.bf16.mxu0 0
        %1167 = vmatpush1.bf16.msra.mxu0 0
        %1168 = vmatprep.subr.bf16.mxu0 0
        %1169 = vmatpush1.bf16.msra.mxu0 0
        %1170 = vmatprep.mubr.bf16.mxu0 0
        %1171 = vmatmul.mubr.bf16.gmra.mrb[0].mxu0 %v1088
        %v1172 = vpop.f32.mrb[0].mxu0
        %v1173 = vadd.f32 0.0, %v1172
        %v1174 = vpop.f32.mrb[0].mxu0
        %v1175 = vpop.f32.mrb[0].mxu0
        %v1176 = vadd.f32 0.0, %v1175
        %v1177 = vpop.f32.mrb[0].mxu0
        %1178 = vdwg.mxu0
        %v1179 = vadd.f32 %v1063, %v1173
        %v1180 = vadd.f32 %v1064, %v1176
        %v1181 = vld [vmem:[%s344] sm:$0xf]
        %v1182 = vld [vmem:[%s344 + $0x4] sm:$0xf]
        %v1183 = vld [vmem:[%s344 + $0x8] sm:$0x1]
        %s1184 = scalar_lea.vmem %s3, 448
        %v1185 = vld [vmem:[%s1184] sm:$0xf]
        %v1186 = vld [vmem:[%s1184 + $0x4] sm:$0xf]
        %v1187 = vld [vmem:[%s1184 + $0x8] sm:$0xf]
        %v1188 = vld [vmem:[%s1184 + $0xc] sm:$0xf]
        %v1189 = vld [vmem:[%s1184 + $0x10] sm:$0xf]
        %v1190 = vld [vmem:[%s1184 + $0x14] sm:$0xf]
        %v1191 = vld [vmem:[%s1184 + $0x18] sm:$0xf]
        %v1192 = vld [vmem:[%s1184 + $0x1c] sm:$0xf]
        %v1193 = vld [vmem:[%s1184 + $0x20] sm:$0xf]
        %v1194 = vld [vmem:[%s1184 + $0x24] sm:$0xf]
        %v1195 = vld [vmem:[%s1184 + $0x28] sm:$0xf]
        %v1196 = vld [vmem:[%s1184 + $0x2c] sm:$0xf]
        %v1197 = vld [vmem:[%s1184 + $0x30] sm:$0xf]
        %v1198 = vld [vmem:[%s1184 + $0x34] sm:$0xf]
        %v1199 = vld [vmem:[%s1184 + $0x38] sm:$0xf]
        %v1200 = vld [vmem:[%s1184 + $0x3c] sm:$0xf]
        %v1204 = vunpack.c.l.b16 %v1181
        %v1205 = vunpack.c.l.b16 %v1182
        %v1206 = vunpack.c.l.b16 %v1183
        %v1207 = vpack.c.b16 %v1205, %v1204
        %v1208 = vpack.c.b16 %v1206, %v1206
        %v1210 = vshrl.u32 %v1207, 16
        %v1212 = vshll.u32 %v1207, 16
        %v1214 = vrot.slane %v1212, 1
        %v1215 = vor.u32 %v1210, %v1214
        %v1217 = vshll.u32 %v1208, 16
        %v1219 = vrot.slane %v1217, 1
        %v1220 = vsel %vm391, %v1215, %v1219
        %v1238 = vunpack.c.l.b16 %v1185
        %v1239 = vunpack.c.l.b16 %v1186
        %v1240 = vunpack.c.l.b16 %v1187
        %v1241 = vunpack.c.l.b16 %v1188
        %v1242 = vunpack.c.l.b16 %v1189
        %v1243 = vunpack.c.l.b16 %v1190
        %v1244 = vunpack.c.l.b16 %v1191
        %v1245 = vunpack.c.l.b16 %v1192
        %v1246 = vunpack.c.l.b16 %v1193
        %v1247 = vunpack.c.l.b16 %v1194
        %v1248 = vunpack.c.l.b16 %v1195
        %v1249 = vunpack.c.l.b16 %v1196
        %v1250 = vunpack.c.l.b16 %v1197
        %v1251 = vunpack.c.l.b16 %v1198
        %v1252 = vunpack.c.l.b16 %v1199
        %v1253 = vunpack.c.l.b16 %v1200
        %v1254 = vpack.c.b16 %v1239, %v1238
        %v1255 = vpack.c.b16 %v1241, %v1240
        %v1256 = vpack.c.b16 %v1243, %v1242
        %v1257 = vpack.c.b16 %v1245, %v1244
        %v1258 = vpack.c.b16 %v1247, %v1246
        %v1259 = vpack.c.b16 %v1249, %v1248
        %v1260 = vpack.c.b16 %v1251, %v1250
        %v1261 = vpack.c.b16 %v1253, %v1252
        %1270 = vmatprep.subr.bf16.mxu0 0
        %1271 = vmatpush1.bf16.msra.mxu0 %v1254
        %1272 = vmatprep.subr.bf16.mxu0 0
        %1273 = vmatpush1.bf16.msra.mxu0 %v1255
        %1274 = vmatprep.subr.bf16.mxu0 0
        %1275 = vmatpush1.bf16.msra.mxu0 %v1256
        %1276 = vmatprep.subr.bf16.mxu0 0
        %1277 = vmatpush1.bf16.msra.mxu0 %v1257
        %1278 = vmatprep.subr.bf16.mxu0 0
        %1279 = vmatpush1.bf16.msra.mxu0 %v1258
        %1280 = vmatprep.subr.bf16.mxu0 0
        %1281 = vmatpush1.bf16.msra.mxu0 %v1259
        %1282 = vmatprep.subr.bf16.mxu0 0
        %1283 = vmatpush1.bf16.msra.mxu0 %v1260
        %1284 = vmatprep.subr.bf16.mxu0 0
        %1285 = vmatpush1.bf16.msra.mxu0 %v1261
        %1286 = vmatprep.subr.bf16.mxu0 0
        %1287 = vmatpush1.bf16.msra.mxu0 0
        %1288 = vmatprep.subr.bf16.mxu0 0
        %1289 = vmatpush1.bf16.msra.mxu0 0
        %1290 = vmatprep.subr.bf16.mxu0 0
        %1291 = vmatpush1.bf16.msra.mxu0 0
        %1292 = vmatprep.subr.bf16.mxu0 0
        %1293 = vmatpush1.bf16.msra.mxu0 0
        %1294 = vmatprep.subr.bf16.mxu0 0
        %1295 = vmatpush1.bf16.msra.mxu0 0
        %1296 = vmatprep.subr.bf16.mxu0 0
        %1297 = vmatpush1.bf16.msra.mxu0 0
        %1298 = vmatprep.subr.bf16.mxu0 0
        %1299 = vmatpush1.bf16.msra.mxu0 0
        %1300 = vmatprep.subr.bf16.mxu0 0
        %1301 = vmatpush1.bf16.msra.mxu0 0
        %1302 = vmatprep.mubr.bf16.mxu0 0
        %1303 = vmatmul.mubr.bf16.gmra.mrb[0].mxu0 %v1220
        %v1304 = vpop.f32.mrb[0].mxu0
        %v1305 = vadd.f32 0.0, %v1304
        %v1306 = vpop.f32.mrb[0].mxu0
        %v1307 = vpop.f32.mrb[0].mxu0
        %v1308 = vadd.f32 0.0, %v1307
        %v1309 = vpop.f32.mrb[0].mxu0
        %1310 = vdwg.mxu0
        %v1311 = vadd.f32 %v1179, %v1305
        %v1312 = vadd.f32 %v1180, %v1308
        %v1313 = vld [vmem:[%s344] sm:$0xe]
        %s1314 = scalar_lea.vmem %s3, 512
        %v1315 = vld [vmem:[%s1314] sm:$0xf]
        %v1316 = vld [vmem:[%s1314 + $0x4] sm:$0xf]
        %v1317 = vld [vmem:[%s1314 + $0x8] sm:$0xf]
        %v1318 = vld [vmem:[%s1314 + $0xc] sm:$0xf]
        %v1319 = vld [vmem:[%s1314 + $0x10] sm:$0xf]
        %v1320 = vld [vmem:[%s1314 + $0x14] sm:$0xf]
        %v1321 = vld [vmem:[%s1314 + $0x18] sm:$0xf]
        %v1322 = vld [vmem:[%s1314 + $0x1c] sm:$0xf]
        %v1323 = vld [vmem:[%s1314 + $0x20] sm:$0xf]
        %v1324 = vld [vmem:[%s1314 + $0x24] sm:$0xf]
        %v1325 = vld [vmem:[%s1314 + $0x28] sm:$0xf]
        %v1326 = vld [vmem:[%s1314 + $0x2c] sm:$0xf]
        %v1327 = vld [vmem:[%s1314 + $0x30] sm:$0xf]
        %v1328 = vld [vmem:[%s1314 + $0x34] sm:$0xf]
        %v1329 = vld [vmem:[%s1314 + $0x38] sm:$0xf]
        %v1330 = vld [vmem:[%s1314 + $0x3c] sm:$0xf]
        %v1332 = vunpack.c.l.b16 %v1313
        %v1333 = vpack.c.b16 %v1205, %v1332
        %v1334 = vrot.slane %v1333, 1
        %v1335 = vrot.slane %v1208, 1
        %v1336 = vsel %vm605, %v1334, %v1335
        %v1354 = vunpack.c.l.b16 %v1315
        %v1355 = vunpack.c.l.b16 %v1316
        %v1356 = vunpack.c.l.b16 %v1317
        %v1357 = vunpack.c.l.b16 %v1318
        %v1358 = vunpack.c.l.b16 %v1319
        %v1359 = vunpack.c.l.b16 %v1320
        %v1360 = vunpack.c.l.b16 %v1321
        %v1361 = vunpack.c.l.b16 %v1322
        %v1362 = vunpack.c.l.b16 %v1323
        %v1363 = vunpack.c.l.b16 %v1324
        %v1364 = vunpack.c.l.b16 %v1325
        %v1365 = vunpack.c.l.b16 %v1326
        %v1366 = vunpack.c.l.b16 %v1327
        %v1367 = vunpack.c.l.b16 %v1328
        %v1368 = vunpack.c.l.b16 %v1329
        %v1369 = vunpack.c.l.b16 %v1330
        %v1370 = vpack.c.b16 %v1355, %v1354
        %v1371 = vpack.c.b16 %v1357, %v1356
        %v1372 = vpack.c.b16 %v1359, %v1358
        %v1373 = vpack.c.b16 %v1361, %v1360
        %v1374 = vpack.c.b16 %v1363, %v1362
        %v1375 = vpack.c.b16 %v1365, %v1364
        %v1376 = vpack.c.b16 %v1367, %v1366
        %v1377 = vpack.c.b16 %v1369, %v1368
        %1386 = vmatprep.subr.bf16.mxu0 0
        %1387 = vmatpush1.bf16.msra.mxu0 %v1370
        %1388 = vmatprep.subr.bf16.mxu0 0
        %1389 = vmatpush1.bf16.msra.mxu0 %v1371
        %1390 = vmatprep.subr.bf16.mxu0 0
        %1391 = vmatpush1.bf16.msra.mxu0 %v1372
        %1392 = vmatprep.subr.bf16.mxu0 0
        %1393 = vmatpush1.bf16.msra.mxu0 %v1373
        %1394 = vmatprep.subr.bf16.mxu0 0
        %1395 = vmatpush1.bf16.msra.mxu0 %v1374
        %1396 = vmatprep.subr.bf16.mxu0 0
        %1397 = vmatpush1.bf16.msra.mxu0 %v1375
        %1398 = vmatprep.subr.bf16.mxu0 0
        %1399 = vmatpush1.bf16.msra.mxu0 %v1376
        %1400 = vmatprep.subr.bf16.mxu0 0
        %1401 = vmatpush1.bf16.msra.mxu0 %v1377
        %1402 = vmatprep.subr.bf16.mxu0 0
        %1403 = vmatpush1.bf16.msra.mxu0 0
        %1404 = vmatprep.subr.bf16.mxu0 0
        %1405 = vmatpush1.bf16.msra.mxu0 0
        %1406 = vmatprep.subr.bf16.mxu0 0
        %1407 = vmatpush1.bf16.msra.mxu0 0
        %1408 = vmatprep.subr.bf16.mxu0 0
        %1409 = vmatpush1.bf16.msra.mxu0 0
        %1410 = vmatprep.subr.bf16.mxu0 0
        %1411 = vmatpush1.bf16.msra.mxu0 0
        %1412 = vmatprep.subr.bf16.mxu0 0
        %1413 = vmatpush1.bf16.msra.mxu0 0
        %1414 = vmatprep.subr.bf16.mxu0 0
        %1415 = vmatpush1.bf16.msra.mxu0 0
        %1416 = vmatprep.subr.bf16.mxu0 0
        %1417 = vmatpush1.bf16.msra.mxu0 0
        %1418 = vmatprep.mubr.bf16.mxu0 0
        %1419 = vmatmul.mubr.bf16.gmra.mrb[0].mxu0 %v1336
        %v1420 = vpop.f32.mrb[0].mxu0
        %v1421 = vadd.f32 0.0, %v1420
        %v1422 = vpop.f32.mrb[0].mxu0
        %v1423 = vpop.f32.mrb[0].mxu0
        %v1424 = vadd.f32 0.0, %v1423
        %v1425 = vpop.f32.mrb[0].mxu0
        %1426 = vdwg.mxu0
        %v1427 = vadd.f32 %v1311, %v1421
        %v1428 = vadd.f32 %v1312, %v1424
        %1429 = vst [vmem:[%s307] sm:$0xff] %v1427
        %1430 = vst [vmem:[%s307 + $0x8] sm:$0xff] %v1428
        %v1431 = vadd.f32 %v1427, %v1428
        %v1432 = vrot.slane %v1431, 4
        %v1433 = vadd.f32 %v1431, %v1432
        %v1434 = vrot.slane %v1433, 2
        %v1435 = vadd.f32 %v1433, %v1434
        %v1436 = vrot.slane %v1435, 1
        %v1437 = vadd.f32 %v1435, %v1436
        %1438 = vst [vmem:[%s314] sm:$0x1] %v1437
        %v1439 = vmul.f32 %v1427, %v1427
        %v1440 = vmul.f32 %v1428, %v1428
        %v1441 = vadd.f32 %v1439, %v1440
        %v1442 = vrot.slane %v1441, 4
        %v1443 = vadd.f32 %v1441, %v1442
        %v1444 = vrot.slane %v1443, 2
        %v1445 = vadd.f32 %v1443, %v1444
        %v1446 = vrot.slane %v1445, 1
        %v1447 = vadd.f32 %v1445, %v1446
        %1448 = vst [vmem:[%s314 + $0x1] sm:$0x1] %v1447
        %s1449 = sand.u32 %s154, 1
        %s1450 = scalar_lea.sflag [#allocation3], %s1449
        %s1451 = sand.u32 %s154, 1
        %s1452 = smul.addr %s1451, 16
        %s1453 = scalar_lea.vmem [#allocation2], %s1452
        %s1454 = sand.u32 %s182, 1
        %s1455 = scalar_lea.sflag [#allocation5], %s1454
        %s1456 = sand.u32 %s182, 1
        %s1457 = smul.addr %s1456, 2
        %s1458 = scalar_lea.vmem [#allocation4], %s1457
        // Predicated region
        $region37: #{tpu_custom_call.1} parent=35 // pred_check
          %p1459 = pneg %p164
        $region38: #{tpu_custom_call.1} parent=35 // pred_check_branch
          %1461 = sbr.rel (%p1459) target = $region40
        $region39: #{tpu_custom_call.1} parent=35 // pred_region
          %s1463 = ssub.s32 256, 256
          %1464 = vsyncadd %s1450, %s1463
          %s1465 = smul.addr %s28, 2
          %s1466 = smul.addr %s27, 32
          %s1467 = sadd.s32 %s1465, %s1466
          %s1468 = smul.addr %s1467, 128
          %s1469 = scalar_lea.hbm %s4, %s1468
          %s1470 = sshll.u32 %s1453, 4
          %s1471 = int_to_ptr.vmem [resolvable:$true] %s1470
          %1476 = dma.vmem_to_hbm [thread:$0]  %s1471, 256, %s1469, %s1450, 128, 128, 8
        $region40: #{tpu_custom_call.1} parent=35 // pred_fallthru
          _
        // Predicated region
        $region41: #{tpu_custom_call.1} parent=35 // pred_check
          %p1477 = pneg %p192
        $region42: #{tpu_custom_call.1} parent=35 // pred_check_branch
          %1479 = sbr.rel (%p1477) target = $region44
        $region43: #{tpu_custom_call.1} parent=35 // pred_region
          %s1481 = ssub.s32 32, 32
          %1482 = vsyncadd %s1455, %s1481
          %s1483 = smul.addr %s27, 16
          %s1484 = sadd.s32 %s28, %s1483
          %s1485 = smul.addr %s1484, 32
          %s1486 = scalar_lea.hbm %s5, %s1485
          %s1488 = sshll.u32 %s1458, 4
          %s1489 = int_to_ptr.vmem [resolvable:$true] %s1488
          %1491 = dma.vmem_to_hbm [thread:$0]  %s1489, 32, %s1486, %s1455
        $region44: #{tpu_custom_call.1} parent=35 // pred_fallthru
          _
      $region36: #{tpu_custom_call.1} parent=5 // pred_fallthru
        _
      %p1492 = scmp.le.s32.totalorder 2, %s18
      // Predicated region
      $region45: #{tpu_custom_call.1} parent=5 // pred_check
        %p1493 = pneg %p1492
      $region46: #{tpu_custom_call.1} parent=5 // pred_check_branch
        %1495 = sbr.rel (%p1493) target = $region48
      $region47: #{tpu_custom_call.1} parent=5 // pred_region
        %s1496 = ssub.s32 %s18, 2
        // Predicated region
        $region49: #{tpu_custom_call.1} parent=47 // pred_check
          %p1497 = pneg %p170
        $region50: #{tpu_custom_call.1} parent=47 // pred_check_branch
          %1499 = sbr.rel (%p1497) target = $region52
        $region51: #{tpu_custom_call.1} parent=47 // pred_region
          %s1500 = sand.u32 %s155, 1
          %s1501 = scalar_lea.sflag [#allocation3], %s1500
          %s1502 = sand.u32 %s155, 1
          %s1503 = smul.addr %s1502, 16
          %s1504 = scalar_lea.vmem [#allocation2], %s1503
          %1505 = dma.done %s1501, 256
        $region52: #{tpu_custom_call.1} parent=47 // pred_fallthru
          _
        // Predicated region
        $region53: #{tpu_custom_call.1} parent=47 // pred_check
          %p1506 = pneg %p198
        $region54: #{tpu_custom_call.1} parent=47 // pred_check_branch
          %1508 = sbr.rel (%p1506) target = $region56
        $region55: #{tpu_custom_call.1} parent=47 // pred_region
          %s1509 = sand.u32 %s183, 1
          %s1510 = scalar_lea.sflag [#allocation5], %s1509
          %s1511 = sand.u32 %s183, 1
          %s1512 = smul.addr %s1511, 2
          %s1513 = scalar_lea.vmem [#allocation4], %s1512
          %1514 = dma.done %s1510, 32
        $region56: #{tpu_custom_call.1} parent=47 // pred_fallthru
          _
      $region48: #{tpu_custom_call.1} parent=5 // pred_fallthru
        _
    $region6: #{tpu_custom_call.1} parent=1 // loop_footer
      %s22 = sadd.s32 1, %s18
    $region7: #{tpu_custom_call.1} parent=1 // loop_footer_branch
      %17 = sbr.rel target = $region3
    $region8: #{tpu_custom_call.1} parent=1 // loop_exit
      _
    %1515 = vsyncpa [#allocation3], 1
    %s1516 = scalar_lea.sflag [#allocation3], 1
    %1517 = vsyncpa %s1516, 1
    %1518 = vsyncpa [#allocation5], 1
    %s1519 = scalar_lea.sflag [#allocation5], 1
    %1520 = vsyncpa %s1519, 1

</llo_original>
